<compile_context>
chip_gen: v7x
topology: tpu7x:2x2x1
jax: 0.10.0
libtpu: 0.0.40
codegen_flags: <defaults>
</compile_context>

<pallas_src>
import math
import numpy as np
import jax
import jax.numpy as jnp
from jax.experimental import pallas as pl
from jax.experimental.pallas import tpu as pltpu

# ----- small, module-consistent hyperparameters (synthetic) -----
B = 2          # batch
T = 8          # sequence length
D_MODEL = 32   # d_model
D_HIDDEN = 32  # d_hidden
H = 4          # number of heads
Q_DIM = 8      # q (per-head query/key dim)
V_DIM = 8      # v (per-head value dim)
LN_EPS = 1e-5

HQ = H * Q_DIM
HV = H * V_DIM


def _layernorm(x, gamma, beta, eps=LN_EPS):
    mean = jnp.mean(x, axis=-1, keepdims=True)
    var = jnp.mean((x - mean) ** 2, axis=-1, keepdims=True)
    return (x - mean) * jax.lax.rsqrt(var + eps) * gamma + beta


def encoder_kernel(
    x_ref,        # (T, D)
    wqkv_ref,     # (D, 2*HQ + HV)   fused [Wq | Wk | Wv]
    bqkv_ref,     # (1, 2*HQ + HV)   fused [bq | bk | bv]
    wo_ref,       # (HV, D)
    w1_ref,       # (D, D_HIDDEN)
    b1_ref,       # (1, D_HIDDEN)
    w2_ref,       # (D_HIDDEN, D)
    vec_ref,      # (6, D)  rows: bo, ln1_gamma, ln1_beta, b2, ln2_gamma, ln2_beta
    out_ref,      # (T, D)
    score_ref,    # (T, H*T) lane-dense raw (pre-softmax) scores
):
    x = x_ref[...]                                           # (T, D)
    vecs = vec_ref[...]                                      # (6, D) — single load
    bo, g1, be1, b2, g2, be2 = (vecs[i:i + 1, :] for i in range(6))

    # --- fused QKV projection: one MXU matmul instead of three ---
    qkv = jnp.dot(x, wqkv_ref[...],
                  preferred_element_type=jnp.float32) + bqkv_ref[...]     # (T, 2HQ+HV)

    # per-head slices gathered into head-batched tensors (pure layout ops)
    qh = jnp.stack([qkv[:, i * Q_DIM:(i + 1) * Q_DIM] for i in range(H)], axis=0)          # (H,T,Q)
    kh = jnp.stack([qkv[:, HQ + i * Q_DIM:HQ + (i + 1) * Q_DIM] for i in range(H)], axis=0)  # (H,T,Q)
    vh = jnp.stack([qkv[:, 2 * HQ + i * V_DIM:2 * HQ + (i + 1) * V_DIM] for i in range(H)],
                   axis=0)                                                                   # (H,T,V)

    # --- batched attention: one dot_general / softmax / dot_general for all heads ---
    scale = 1.0 / math.sqrt(Q_DIM)
    s = jnp.einsum('htq,hsq->hts', qh, kh,
                   preferred_element_type=jnp.float32) * scale            # (H, T, T)

    # raw (pre-softmax) score, single lane-dense store (T, H*T)
    score_ref[...] = jnp.concatenate([s[i] for i in range(H)], axis=-1)

    # softmax over last dim, one chain for all heads; reciprocal on the EUP
    m = jnp.max(s, axis=-1, keepdims=True)
    e = jnp.exp(s - m)
    p = e * pl.reciprocal(jnp.sum(e, axis=-1, keepdims=True), approx=True)

    att = jnp.einsum('hts,hsv->htv', p, vh,
                     preferred_element_type=jnp.float32)                  # (H, T, V)
    attn_heads = jnp.concatenate([att[i] for i in range(H)], axis=-1)     # (T, HV)
    attn = jnp.dot(attn_heads, wo_ref[...],
                   preferred_element_type=jnp.float32) + bo               # (T, D)

    # dropout is identity in eval; residual + layernorm 1
    x1 = _layernorm(attn + x, g1, be1)

    # --- feed-forward ---
    hdn = jnp.maximum(
        jnp.dot(x1, w1_ref[...], preferred_element_type=jnp.float32) + b1_ref[...], 0.0)
    ff = jnp.dot(hdn, w2_ref[...], preferred_element_type=jnp.float32) + b2

    # residual + layernorm 2
    out_ref[...] = _layernorm(ff + x1, g2, be2)


def encoder_forward(x, params):
    """x: (B, T, D_MODEL) fp32. Returns (out (B,T,D), score (H*B, T, T))."""
    Bn, Tn, Dn = x.shape
    assert (Tn, Dn) == (T, D_MODEL)

    (wq, bq, wk, bk, wv, bv, wo, bo,
     g1, be1, w1, b1, w2, b2, g2, be2) = params

    # ---- host-side packing: fuse QKV, bundle all (1, D) vectors into one slab ----
    wqkv = jnp.concatenate([wq, wk, wv], axis=1)          # (D, 2*HQ+HV)
    bqkv = jnp.concatenate([bq, bk, bv], axis=1)          # (1, 2*HQ+HV)
    vecs = jnp.concatenate([bo, g1, be1, b2, g2, be2], axis=0)   # (6, D)

    kernel_inputs = (x, wqkv, bqkv, wo, w1, b1, w2, vecs)

    def full2d(p):
        return pl.BlockSpec(p.shape, lambda b: (0, 0))

    in_specs = [pl.BlockSpec((None, T, D_MODEL), lambda b: (b, 0, 0))] + \
               [full2d(p) for p in kernel_inputs[1:]]

    out_specs = [
        pl.BlockSpec((None, T, D_MODEL), lambda b: (b, 0, 0)),
        pl.BlockSpec((None, T, H * T), lambda b: (b, 0, 0)),
    ]
    out_shape = [
        jax.ShapeDtypeStruct((Bn, T, D_MODEL), jnp.float32),
        jax.ShapeDtypeStruct((Bn, T, H * T), jnp.float32),
    ]

    out, score_slab = pl.pallas_call(
        encoder_kernel,
        grid=(Bn,),
        in_specs=in_specs,
        out_specs=out_specs,
        out_shape=out_shape,
        compiler_params=pltpu.CompilerParams(dimension_semantics=("parallel",)),
    )(*kernel_inputs)

    # slab[b, t, h*T + s]  ->  torch.cat(chunks, dim=0) layout: score[h*B + b, t, s]
    score = score_slab.reshape(Bn, T, H, T).transpose(2, 0, 1, 3).reshape(H * Bn, T, T)
    return out, score


def make_params(key):
    """Deterministic synthetic parameters, stored as [in, out] (transposed vs torch)."""
    ks = jax.random.split(key, 16)
    s = 0.1

    def rnd(k, shape):
        return jax.random.normal(k, shape, dtype=jnp.float32) * s

    wq = rnd(ks[0], (D_MODEL, HQ)); bq = rnd(ks[1], (1, HQ))
    wk = rnd(ks[2], (D_MODEL, HQ)); bk = rnd(ks[3], (1, HQ))
    wv = rnd(ks[4], (D_MODEL, HV)); bv = rnd(ks[5], (1, HV))
    wo = rnd(ks[6], (HV, D_MODEL)); bo = rnd(ks[7], (1, D_MODEL))
    g1 = jnp.ones((1, D_MODEL), jnp.float32); be1 = jnp.zeros((1, D_MODEL), jnp.float32)
    w1 = rnd(ks[8], (D_MODEL, D_HIDDEN)); b1 = rnd(ks[9], (1, D_HIDDEN))
    w2 = rnd(ks[10], (D_HIDDEN, D_MODEL)); b2 = rnd(ks[11], (1, D_MODEL))
    g2 = jnp.ones((1, D_MODEL), jnp.float32); be2 = jnp.zeros((1, D_MODEL), jnp.float32)
    return (wq, bq, wk, bk, wv, bv, wo, bo, g1, be1, w1, b1, w2, b2, g2, be2)


def reference_forward(x, params):
    """Pure-JAX reference mirroring the PyTorch eval-mode forward."""
    (wq, bq, wk, bk, wv, bv, wo, bo, g1, be1, w1, b1, w2, b2, g2, be2) = params
    Qa = x @ wq + bq
    Ka = x @ wk + bk
    Va = x @ wv + bv
    # chunk along last dim, cat along batch dim
    Qc = jnp.concatenate(jnp.split(Qa, H, axis=-1), axis=0)   # (H*B, T, q)
    Kc = jnp.concatenate(jnp.split(Ka, H, axis=-1), axis=0)
    Vc = jnp.concatenate(jnp.split(Va, H, axis=-1), axis=0)
    score = jnp.einsum('btq,bsq->bts', Qc, Kc) / math.sqrt(Q_DIM)
    p = jax.nn.softmax(score, axis=-1)
    att = jnp.einsum('bts,bsv->btv', p, Vc)
    att_heads = jnp.concatenate(jnp.split(att, H, axis=0), axis=-1)  # (B, T, v*h)
    sa = att_heads @ wo + bo
    x1 = _layernorm(sa + x, g1, be1)
    ff = jnp.maximum(x1 @ w1 + b1, 0.0) @ w2 + b2
    out = _layernorm(ff + x1, g2, be2)
    return out, score


if __name__ == "__main__":
    key = jax.random.PRNGKey(0)
    kx, kp = jax.random.split(key)
    x = jax.random.normal(kx, (B, T, D_MODEL), dtype=jnp.float32)
    params = make_params(kp)

    out, score = encoder_forward(x, params)
    out = jax.block_until_ready(out)
    score = jax.block_until_ready(score)

    out_ref, score_ref = reference_forward(x, params)
    # score is computed pre-softmax (exact path) -> tight tolerance.
    np.testing.assert_allclose(np.asarray(score), np.asarray(score_ref), rtol=1e-5, atol=1e-5)
    # out goes through the approx-reciprocal softmax (EUP vrcp) -> slightly looser tolerance.
    np.testing.assert_allclose(np.asarray(out), np.asarray(out_ref), rtol=5e-3, atol=5e-4)

    print("KERNEL_OK")
</pallas_src>

<mosaic_0001>
module attributes {stable_mosaic.version = 11 : i64} {
  func.func @encoder_kernel(%arg0: i32, %arg1: memref<1x8x32xf32, #tpu.memory_space<vmem>>, %arg2: memref<32x96xf32, #tpu.memory_space<vmem>>, %arg3: memref<1x96xf32, #tpu.memory_space<vmem>>, %arg4: memref<32x32xf32, #tpu.memory_space<vmem>>, %arg5: memref<32x32xf32, #tpu.memory_space<vmem>>, %arg6: memref<1x32xf32, #tpu.memory_space<vmem>>, %arg7: memref<32x32xf32, #tpu.memory_space<vmem>>, %arg8: memref<6x32xf32, #tpu.memory_space<vmem>>, %arg9: memref<1x8x32xf32, #tpu.memory_space<vmem>>, %arg10: memref<1x8x32xf32, #tpu.memory_space<vmem>>) attributes {dimension_semantics = [#tpu.dimension_semantics<parallel>], iteration_bounds = array<i64: 2>, scalar_prefetch = 0 : i64, scratch_operands = 0 : i64, tpu.core_type = #tpu.core_type<tc>, window_params = [{transform_indices = @transform_0, window_bounds = array<i64: 1, 8, 32>}, {pipeline_mode = #tpu.pipeline_mode<synchronous>, transform_indices = @transform_1, window_bounds = array<i64: 32, 96>}, {pipeline_mode = #tpu.pipeline_mode<synchronous>, transform_indices = @transform_2, window_bounds = array<i64: 1, 96>}, {pipeline_mode = #tpu.pipeline_mode<synchronous>, transform_indices = @transform_3, window_bounds = array<i64: 32, 32>}, {pipeline_mode = #tpu.pipeline_mode<synchronous>, transform_indices = @transform_4, window_bounds = array<i64: 32, 32>}, {pipeline_mode = #tpu.pipeline_mode<synchronous>, transform_indices = @transform_5, window_bounds = array<i64: 1, 32>}, {pipeline_mode = #tpu.pipeline_mode<synchronous>, transform_indices = @transform_6, window_bounds = array<i64: 32, 32>}, {pipeline_mode = #tpu.pipeline_mode<synchronous>, transform_indices = @transform_7, window_bounds = array<i64: 6, 32>}, {transform_indices = @transform_8, window_bounds = array<i64: 1, 8, 32>}, {transform_indices = @transform_9, window_bounds = array<i64: 1, 8, 32>}]} {
    %c0 = arith.constant 0 : index
    %c0_0 = arith.constant 0 : index
    %c0_1 = arith.constant 0 : index
    %0 = vector.load %arg1[%c0, %c0_0, %c0_1] : memref<1x8x32xf32, #tpu.memory_space<vmem>>, vector<1x8x32xf32>
    %1 = vector.shape_cast %0 : vector<1x8x32xf32> to vector<8x32xf32>
    %c0_2 = arith.constant 0 : index
    %c0_3 = arith.constant 0 : index
    %2 = vector.load %arg8[%c0_2, %c0_3] : memref<6x32xf32, #tpu.memory_space<vmem>>, vector<6x32xf32>
    %3 = vector.extract_strided_slice %2 {offsets = [0, 0], sizes = [1, 32], strides = [1, 1]} : vector<6x32xf32> to vector<1x32xf32>
    %4 = vector.extract_strided_slice %2 {offsets = [1, 0], sizes = [1, 32], strides = [1, 1]} : vector<6x32xf32> to vector<1x32xf32>
    %5 = vector.extract_strided_slice %2 {offsets = [2, 0], sizes = [1, 32], strides = [1, 1]} : vector<6x32xf32> to vector<1x32xf32>
    %6 = vector.extract_strided_slice %2 {offsets = [3, 0], sizes = [1, 32], strides = [1, 1]} : vector<6x32xf32> to vector<1x32xf32>
    %7 = vector.extract_strided_slice %2 {offsets = [4, 0], sizes = [1, 32], strides = [1, 1]} : vector<6x32xf32> to vector<1x32xf32>
    %8 = vector.extract_strided_slice %2 {offsets = [5, 0], sizes = [1, 32], strides = [1, 1]} : vector<6x32xf32> to vector<1x32xf32>
    %c0_4 = arith.constant 0 : index
    %c0_5 = arith.constant 0 : index
    %9 = vector.load %arg2[%c0_4, %c0_5] : memref<32x96xf32, #tpu.memory_space<vmem>>, vector<32x96xf32>
    %cst = arith.constant dense<0.000000e+00> : vector<8x96xf32>
    %10 = tpu.matmul %1, %9, %cst {dimension_numbers = #tpu.dot_dimension_numbers<[1], [0], [0], [1], [0, 0, 1, 1], [], []>} : vector<8x32xf32>, vector<32x96xf32>, vector<8x96xf32> -> vector<8x96xf32>
    %c0_6 = arith.constant 0 : index
    %c0_7 = arith.constant 0 : index
    %11 = vector.load %arg3[%c0_6, %c0_7] : memref<1x96xf32, #tpu.memory_space<vmem>>, vector<1x96xf32>
    %12 = vector.broadcast %11 : vector<1x96xf32> to vector<8x96xf32>
    %13 = arith.addf %10, %12 : vector<8x96xf32>
    %14 = vector.extract_strided_slice %13 {offsets = [0, 0], sizes = [8, 8], strides = [1, 1]} : vector<8x96xf32> to vector<8x8xf32>
    %15 = vector.extract_strided_slice %13 {offsets = [0, 8], sizes = [8, 8], strides = [1, 1]} : vector<8x96xf32> to vector<8x8xf32>
    %16 = vector.extract_strided_slice %13 {offsets = [0, 16], sizes = [8, 8], strides = [1, 1]} : vector<8x96xf32> to vector<8x8xf32>
    %17 = vector.extract_strided_slice %13 {offsets = [0, 24], sizes = [8, 8], strides = [1, 1]} : vector<8x96xf32> to vector<8x8xf32>
    %18 = vector.shape_cast %14 : vector<8x8xf32> to vector<1x8x8xf32>
    %19 = vector.shape_cast %15 : vector<8x8xf32> to vector<1x8x8xf32>
    %20 = vector.shape_cast %16 : vector<8x8xf32> to vector<1x8x8xf32>
    %21 = vector.shape_cast %17 : vector<8x8xf32> to vector<1x8x8xf32>
    %22 = tpu.concatenate %18, %19, %20, %21 in 0 : vector<1x8x8xf32>, vector<1x8x8xf32>, vector<1x8x8xf32>, vector<1x8x8xf32> -> vector<4x8x8xf32>
    %23 = vector.extract_strided_slice %13 {offsets = [0, 32], sizes = [8, 8], strides = [1, 1]} : vector<8x96xf32> to vector<8x8xf32>
    %24 = vector.extract_strided_slice %13 {offsets = [0, 40], sizes = [8, 8], strides = [1, 1]} : vector<8x96xf32> to vector<8x8xf32>
    %25 = vector.extract_strided_slice %13 {offsets = [0, 48], sizes = [8, 8], strides = [1, 1]} : vector<8x96xf32> to vector<8x8xf32>
    %26 = vector.extract_strided_slice %13 {offsets = [0, 56], sizes = [8, 8], strides = [1, 1]} : vector<8x96xf32> to vector<8x8xf32>
    %27 = vector.shape_cast %23 : vector<8x8xf32> to vector<1x8x8xf32>
    %28 = vector.shape_cast %24 : vector<8x8xf32> to vector<1x8x8xf32>
    %29 = vector.shape_cast %25 : vector<8x8xf32> to vector<1x8x8xf32>
    %30 = vector.shape_cast %26 : vector<8x8xf32> to vector<1x8x8xf32>
    %31 = tpu.concatenate %27, %28, %29, %30 in 0 : vector<1x8x8xf32>, vector<1x8x8xf32>, vector<1x8x8xf32>, vector<1x8x8xf32> -> vector<4x8x8xf32>
    %32 = vector.extract_strided_slice %13 {offsets = [0, 64], sizes = [8, 8], strides = [1, 1]} : vector<8x96xf32> to vector<8x8xf32>
    %33 = vector.extract_strided_slice %13 {offsets = [0, 72], sizes = [8, 8], strides = [1, 1]} : vector<8x96xf32> to vector<8x8xf32>
    %34 = vector.extract_strided_slice %13 {offsets = [0, 80], sizes = [8, 8], strides = [1, 1]} : vector<8x96xf32> to vector<8x8xf32>
    %35 = vector.extract_strided_slice %13 {offsets = [0, 88], sizes = [8, 8], strides = [1, 1]} : vector<8x96xf32> to vector<8x8xf32>
    %36 = vector.shape_cast %32 : vector<8x8xf32> to vector<1x8x8xf32>
    %37 = vector.shape_cast %33 : vector<8x8xf32> to vector<1x8x8xf32>
    %38 = vector.shape_cast %34 : vector<8x8xf32> to vector<1x8x8xf32>
    %39 = vector.shape_cast %35 : vector<8x8xf32> to vector<1x8x8xf32>
    %40 = tpu.concatenate %36, %37, %38, %39 in 0 : vector<1x8x8xf32>, vector<1x8x8xf32>, vector<1x8x8xf32>, vector<1x8x8xf32> -> vector<4x8x8xf32>
    "tpu.trace_start"() <{level = 10 : i32, message = "htq,hsq->hts"}> : () -> ()
    %cst_8 = arith.constant dense<0.000000e+00> : vector<4x8x8xf32>
    %41 = tpu.matmul %22, %31, %cst_8 {dimension_numbers = #tpu.dot_dimension_numbers<[2], [2], [1], [1], [0, 0, 0, 1, 1, 1], [0], [0]>} : vector<4x8x8xf32>, vector<4x8x8xf32>, vector<4x8x8xf32> -> vector<4x8x8xf32>
    "tpu.trace_stop"() : () -> ()
    %cst_9 = arith.constant 0.353553385 : f32
    %42 = vector.broadcast %cst_9 : f32 to vector<4x8x8xf32>
    %43 = arith.mulf %41, %42 : vector<4x8x8xf32>
    %44 = vector.extract_strided_slice %43 {offsets = [0, 0, 0], sizes = [1, 8, 8], strides = [1, 1, 1]} : vector<4x8x8xf32> to vector<1x8x8xf32>
    %45 = vector.shape_cast %44 : vector<1x8x8xf32> to vector<8x8xf32>
    %46 = vector.extract_strided_slice %43 {offsets = [1, 0, 0], sizes = [1, 8, 8], strides = [1, 1, 1]} : vector<4x8x8xf32> to vector<1x8x8xf32>
    %47 = vector.shape_cast %46 : vector<1x8x8xf32> to vector<8x8xf32>
    %48 = vector.extract_strided_slice %43 {offsets = [2, 0, 0], sizes = [1, 8, 8], strides = [1, 1, 1]} : vector<4x8x8xf32> to vector<1x8x8xf32>
    %49 = vector.shape_cast %48 : vector<1x8x8xf32> to vector<8x8xf32>
    %50 = vector.extract_strided_slice %43 {offsets = [3, 0, 0], sizes = [1, 8, 8], strides = [1, 1, 1]} : vector<4x8x8xf32> to vector<1x8x8xf32>
    %51 = vector.shape_cast %50 : vector<1x8x8xf32> to vector<8x8xf32>
    %52 = tpu.concatenate %45, %47, %49, %51 in 1 : vector<8x8xf32>, vector<8x8xf32>, vector<8x8xf32>, vector<8x8xf32> -> vector<8x32xf32>
    %c0_10 = arith.constant 0 : index
    %c0_11 = arith.constant 0 : index
    %c0_12 = arith.constant 0 : index
    %53 = vector.load %arg10[%c0_10, %c0_11, %c0_12] : memref<1x8x32xf32, #tpu.memory_space<vmem>>, vector<1x8x32xf32>
    %54 = vector.shape_cast %53 : vector<1x8x32xf32> to vector<8x32xf32>
    %55 = vector.shape_cast %52 : vector<8x32xf32> to vector<1x8x32xf32>
    tpu.vector_store %arg10[%c0_10, %c0_11, %c0_12], %55 {strides = array<i32>} : memref<1x8x32xf32, #tpu.memory_space<vmem>>, vector<1x8x32xf32>,
    %cst_13 = arith.constant dense<0xFF800000> : vector<4x8xf32>
    %56 = vector.multi_reduction <maximumf>, %43, %cst_13 [2] : vector<4x8x8xf32> to vector<4x8xf32>
    %57 = vector.shape_cast %56 : vector<4x8xf32> to vector<4x8x1xf32>
    %58 = vector.broadcast %57 : vector<4x8x1xf32> to vector<4x8x8xf32>
    %59 = arith.subf %43, %58 : vector<4x8x8xf32>
    %60 = math.exp %59 : vector<4x8x8xf32>
    %cst_14 = arith.constant dense<0.000000e+00> : vector<4x8xf32>
    %61 = vector.multi_reduction <add>, %60, %cst_14 [2] : vector<4x8x8xf32> to vector<4x8xf32>
    %62 = vector.shape_cast %61 : vector<4x8xf32> to vector<4x8x1xf32>
    %63 = tpu.reciprocal %62 {approx = true} : vector<4x8x1xf32> -> vector<4x8x1xf32>
    %64 = vector.broadcast %63 : vector<4x8x1xf32> to vector<4x8x8xf32>
    %65 = arith.mulf %60, %64 : vector<4x8x8xf32>
    "tpu.trace_start"() <{level = 10 : i32, message = "hts,hsv->htv"}> : () -> ()
    %cst_15 = arith.constant dense<0.000000e+00> : vector<4x8x8xf32>
    %66 = tpu.matmul %65, %40, %cst_15 {dimension_numbers = #tpu.dot_dimension_numbers<[2], [1], [1], [2], [0, 0, 0, 1, 1, 2], [0], [0]>} : vector<4x8x8xf32>, vector<4x8x8xf32>, vector<4x8x8xf32> -> vector<4x8x8xf32>
    "tpu.trace_stop"() : () -> ()
    %67 = vector.extract_strided_slice %66 {offsets = [0, 0, 0], sizes = [1, 8, 8], strides = [1, 1, 1]} : vector<4x8x8xf32> to vector<1x8x8xf32>
    %68 = vector.shape_cast %67 : vector<1x8x8xf32> to vector<8x8xf32>
    %69 = vector.extract_strided_slice %66 {offsets = [1, 0, 0], sizes = [1, 8, 8], strides = [1, 1, 1]} : vector<4x8x8xf32> to vector<1x8x8xf32>
    %70 = vector.shape_cast %69 : vector<1x8x8xf32> to vector<8x8xf32>
    %71 = vector.extract_strided_slice %66 {offsets = [2, 0, 0], sizes = [1, 8, 8], strides = [1, 1, 1]} : vector<4x8x8xf32> to vector<1x8x8xf32>
    %72 = vector.shape_cast %71 : vector<1x8x8xf32> to vector<8x8xf32>
    %73 = vector.extract_strided_slice %66 {offsets = [3, 0, 0], sizes = [1, 8, 8], strides = [1, 1, 1]} : vector<4x8x8xf32> to vector<1x8x8xf32>
    %74 = vector.shape_cast %73 : vector<1x8x8xf32> to vector<8x8xf32>
    %75 = tpu.concatenate %68, %70, %72, %74 in 1 : vector<8x8xf32>, vector<8x8xf32>, vector<8x8xf32>, vector<8x8xf32> -> vector<8x32xf32>
    %c0_16 = arith.constant 0 : index
    %c0_17 = arith.constant 0 : index
    %76 = vector.load %arg4[%c0_16, %c0_17] : memref<32x32xf32, #tpu.memory_space<vmem>>, vector<32x32xf32>
    %cst_18 = arith.constant dense<0.000000e+00> : vector<8x32xf32>
    %77 = tpu.matmul %75, %76, %cst_18 {dimension_numbers = #tpu.dot_dimension_numbers<[1], [0], [0], [1], [0, 0, 1, 1], [], []>} : vector<8x32xf32>, vector<32x32xf32>, vector<8x32xf32> -> vector<8x32xf32>
    %78 = vector.broadcast %3 : vector<1x32xf32> to vector<8x32xf32>
    %79 = arith.addf %77, %78 : vector<8x32xf32>
    %80 = arith.addf %79, %1 : vector<8x32xf32>
    %cst_19 = arith.constant dense<0.000000e+00> : vector<8xf32>
    %81 = vector.multi_reduction <add>, %80, %cst_19 [1] : vector<8x32xf32> to vector<8xf32>
    %82 = vector.shape_cast %81 : vector<8xf32> to vector<8x1xf32>
    %cst_20 = arith.constant 3.200000e+01 : f32
    %83 = vector.broadcast %cst_20 : f32 to vector<8x1xf32>
    %84 = arith.divf %82, %83 : vector<8x1xf32>
    %85 = vector.broadcast %84 : vector<8x1xf32> to vector<8x32xf32>
    %86 = arith.subf %80, %85 : vector<8x32xf32>
    %87 = arith.mulf %86, %86 : vector<8x32xf32>
    %cst_21 = arith.constant dense<0.000000e+00> : vector<8xf32>
    %88 = vector.multi_reduction <add>, %87, %cst_21 [1] : vector<8x32xf32> to vector<8xf32>
    %89 = vector.shape_cast %88 : vector<8xf32> to vector<8x1xf32>
    %cst_22 = arith.constant 3.200000e+01 : f32
    %90 = vector.broadcast %cst_22 : f32 to vector<8x1xf32>
    %91 = arith.divf %89, %90 : vector<8x1xf32>
    %92 = vector.broadcast %84 : vector<8x1xf32> to vector<8x32xf32>
    %93 = arith.subf %80, %92 : vector<8x32xf32>
    %cst_23 = arith.constant 9.99999974E-6 : f32
    %94 = vector.broadcast %cst_23 : f32 to vector<8x1xf32>
    %95 = arith.addf %91, %94 : vector<8x1xf32>
    %96 = math.rsqrt %95 : vector<8x1xf32>
    %97 = vector.broadcast %96 : vector<8x1xf32> to vector<8x32xf32>
    %98 = arith.mulf %93, %97 : vector<8x32xf32>
    %99 = vector.broadcast %4 : vector<1x32xf32> to vector<8x32xf32>
    %100 = arith.mulf %98, %99 : vector<8x32xf32>
    %101 = vector.broadcast %5 : vector<1x32xf32> to vector<8x32xf32>
    %102 = arith.addf %100, %101 : vector<8x32xf32>
    %c0_24 = arith.constant 0 : index
    %c0_25 = arith.constant 0 : index
    %103 = vector.load %arg5[%c0_24, %c0_25] : memref<32x32xf32, #tpu.memory_space<vmem>>, vector<32x32xf32>
    %cst_26 = arith.constant dense<0.000000e+00> : vector<8x32xf32>
    %104 = tpu.matmul %102, %103, %cst_26 {dimension_numbers = #tpu.dot_dimension_numbers<[1], [0], [0], [1], [0, 0, 1, 1], [], []>} : vector<8x32xf32>, vector<32x32xf32>, vector<8x32xf32> -> vector<8x32xf32>
    %c0_27 = arith.constant 0 : index
    %c0_28 = arith.constant 0 : index
    %105 = vector.load %arg6[%c0_27, %c0_28] : memref<1x32xf32, #tpu.memory_space<vmem>>, vector<1x32xf32>
    %106 = vector.broadcast %105 : vector<1x32xf32> to vector<8x32xf32>
    %107 = arith.addf %104, %106 : vector<8x32xf32>
    %cst_29 = arith.constant 0.000000e+00 : f32
    %108 = vector.broadcast %cst_29 : f32 to vector<8x32xf32>
    %109 = arith.maximumf %107, %108 : vector<8x32xf32>
    %c0_30 = arith.constant 0 : index
    %c0_31 = arith.constant 0 : index
    %110 = vector.load %arg7[%c0_30, %c0_31] : memref<32x32xf32, #tpu.memory_space<vmem>>, vector<32x32xf32>
    %cst_32 = arith.constant dense<0.000000e+00> : vector<8x32xf32>
    %111 = tpu.matmul %109, %110, %cst_32 {dimension_numbers = #tpu.dot_dimension_numbers<[1], [0], [0], [1], [0, 0, 1, 1], [], []>} : vector<8x32xf32>, vector<32x32xf32>, vector<8x32xf32> -> vector<8x32xf32>
    %112 = vector.broadcast %6 : vector<1x32xf32> to vector<8x32xf32>
    %113 = arith.addf %111, %112 : vector<8x32xf32>
    %114 = arith.addf %113, %102 : vector<8x32xf32>
    %cst_33 = arith.constant dense<0.000000e+00> : vector<8xf32>
    %115 = vector.multi_reduction <add>, %114, %cst_33 [1] : vector<8x32xf32> to vector<8xf32>
    %116 = vector.shape_cast %115 : vector<8xf32> to vector<8x1xf32>
    %cst_34 = arith.constant 3.200000e+01 : f32
    %117 = vector.broadcast %cst_34 : f32 to vector<8x1xf32>
    %118 = arith.divf %116, %117 : vector<8x1xf32>
    %119 = vector.broadcast %118 : vector<8x1xf32> to vector<8x32xf32>
    %120 = arith.subf %114, %119 : vector<8x32xf32>
    %121 = arith.mulf %120, %120 : vector<8x32xf32>
    %cst_35 = arith.constant dense<0.000000e+00> : vector<8xf32>
    %122 = vector.multi_reduction <add>, %121, %cst_35 [1] : vector<8x32xf32> to vector<8xf32>
    %123 = vector.shape_cast %122 : vector<8xf32> to vector<8x1xf32>
    %cst_36 = arith.constant 3.200000e+01 : f32
    %124 = vector.broadcast %cst_36 : f32 to vector<8x1xf32>
    %125 = arith.divf %123, %124 : vector<8x1xf32>
    %126 = vector.broadcast %118 : vector<8x1xf32> to vector<8x32xf32>
    %127 = arith.subf %114, %126 : vector<8x32xf32>
    %cst_37 = arith.constant 9.99999974E-6 : f32
    %128 = vector.broadcast %cst_37 : f32 to vector<8x1xf32>
    %129 = arith.addf %125, %128 : vector<8x1xf32>
    %130 = math.rsqrt %129 : vector<8x1xf32>
    %131 = vector.broadcast %130 : vector<8x1xf32> to vector<8x32xf32>
    %132 = arith.mulf %127, %131 : vector<8x32xf32>
    %133 = vector.broadcast %7 : vector<1x32xf32> to vector<8x32xf32>
    %134 = arith.mulf %132, %133 : vector<8x32xf32>
    %135 = vector.broadcast %8 : vector<1x32xf32> to vector<8x32xf32>
    %136 = arith.addf %134, %135 : vector<8x32xf32>
    %c0_38 = arith.constant 0 : index
    %c0_39 = arith.constant 0 : index
    %c0_40 = arith.constant 0 : index
    %137 = vector.load %arg9[%c0_38, %c0_39, %c0_40] : memref<1x8x32xf32, #tpu.memory_space<vmem>>, vector<1x8x32xf32>
    %138 = vector.shape_cast %137 : vector<1x8x32xf32> to vector<8x32xf32>
    %139 = vector.shape_cast %136 : vector<8x32xf32> to vector<1x8x32xf32>
    tpu.vector_store %arg9[%c0_38, %c0_39, %c0_40], %139 {strides = array<i32>} : memref<1x8x32xf32, #tpu.memory_space<vmem>>, vector<1x8x32xf32>,
    return
  }
  func.func @transform_0(%arg0: i32) -> (i32, i32, i32) {
    %c0_i32 = arith.constant 0 : i32
    %c0_i32_0 = arith.constant 0 : i32
    %c0_i32_1 = arith.constant 0 : i32
    return %arg0, %c0_i32, %c0_i32_0 : i32, i32, i32
  }
  func.func @transform_1(%arg0: i32) -> (i32, i32) {
    %c0_i32 = arith.constant 0 : i32
    %c0_i32_0 = arith.constant 0 : i32
    %c0_i32_1 = arith.constant 0 : i32
    return %c0_i32, %c0_i32_0 : i32, i32
  }
  func.func @transform_2(%arg0: i32) -> (i32, i32) {
    %c0_i32 = arith.constant 0 : i32
    %c0_i32_0 = arith.constant 0 : i32
    %c0_i32_1 = arith.constant 0 : i32
    return %c0_i32, %c0_i32_0 : i32, i32
  }
  func.func @transform_3(%arg0: i32) -> (i32, i32) {
    %c0_i32 = arith.constant 0 : i32
    %c0_i32_0 = arith.constant 0 : i32
    %c0_i32_1 = arith.constant 0 : i32
    return %c0_i32, %c0_i32_0 : i32, i32
  }
  func.func @transform_4(%arg0: i32) -> (i32, i32) {
    %c0_i32 = arith.constant 0 : i32
    %c0_i32_0 = arith.constant 0 : i32
    %c0_i32_1 = arith.constant 0 : i32
    return %c0_i32, %c0_i32_0 : i32, i32
  }
  func.func @transform_5(%arg0: i32) -> (i32, i32) {
    %c0_i32 = arith.constant 0 : i32
    %c0_i32_0 = arith.constant 0 : i32
    %c0_i32_1 = arith.constant 0 : i32
    return %c0_i32, %c0_i32_0 : i32, i32
  }
  func.func @transform_6(%arg0: i32) -> (i32, i32) {
    %c0_i32 = arith.constant 0 : i32
    %c0_i32_0 = arith.constant 0 : i32
    %c0_i32_1 = arith.constant 0 : i32
    return %c0_i32, %c0_i32_0 : i32, i32
  }
  func.func @transform_7(%arg0: i32) -> (i32, i32) {
    %c0_i32 = arith.constant 0 : i32
    %c0_i32_0 = arith.constant 0 : i32
    %c0_i32_1 = arith.constant 0 : i32
    return %c0_i32, %c0_i32_0 : i32, i32
  }
  func.func @transform_8(%arg0: i32) -> (i32, i32, i32) {
    %c0_i32 = arith.constant 0 : i32
    %c0_i32_0 = arith.constant 0 : i32
    %c0_i32_1 = arith.constant 0 : i32
    return %arg0, %c0_i32, %c0_i32_0 : i32, i32, i32
  }
  func.func @transform_9(%arg0: i32) -> (i32, i32, i32) {
    %c0_i32 = arith.constant 0 : i32
    %c0_i32_0 = arith.constant 0 : i32
    %c0_i32_1 = arith.constant 0 : i32
    return %arg0, %c0_i32, %c0_i32_0 : i32, i32, i32
  }
}

</mosaic_0001>

<llo_original>
// kernel: tpu_custom_call.1
$region0: #{tpu_custom_call.1}
  #allocation0 [shape = 'u32[]', space=smem, size = 0x4, offset = 0x4, fixed_abs, tag = 'smem constant byte address 0x4 - core index']
  #allocation1 [shape = 'u32[144,128]{1,0:T(1,128)}', space=vmem, size = 0x12000, scoped, tag = 'internal scratch']
  %s0 = inlined_call_operand.hbm [shape: f32[2,8,32], index: 0, kind: input, shape index: {}]
  %s1 = inlined_call_operand.hbm [shape: f32[32,96], index: 1, kind: input, shape index: {}]
  %s2 = inlined_call_operand.vmem [shape: f32[1,96], index: 2, kind: input, shape index: {}]
  %s3 = inlined_call_operand.hbm [shape: f32[32,32], index: 3, kind: input, shape index: {}]
  %s4 = inlined_call_operand.hbm [shape: f32[32,32], index: 4, kind: input, shape index: {}]
  %s5 = inlined_call_operand.vmem [shape: f32[1,32], index: 5, kind: input, shape index: {}]
  %s6 = inlined_call_operand.hbm [shape: f32[32,32], index: 6, kind: input, shape index: {}]
  %s7 = inlined_call_operand.vmem [shape: f32[6,32], index: 7, kind: input, shape index: {}]
  %s8 = inlined_call_operand.hbm [shape: f32[2,8,32], index: 8, kind: output, shape index: {0}]
  %s9 = inlined_call_operand.hbm [shape: f32[2,8,32], index: 9, kind: output, shape index: {1}]
  %10 = xla_tuple %s8, %s9
  %s11 = sld [smem:[#allocation0]]
  $region93: #{tpu_custom_call.1} parent=0
    _
  %s13 = ssub.s32 1, %s11
  %s14 = scalar_select 0, %s13, %s11
  $region1: #{tpu_custom_call.1} parent=0
    #allocation2 [shape = 'u8[8192]{0}', space=vmem, size = 0x2000, scoped, tag = 'input window, operand 0']
    #allocation3 [shape = 's32[2]{0}', space=sflag, size = 0x8, scoped, tag = 'scoped memory for tpu_custom_call.1']
    #allocation4 [shape = 's32[2]{0}', space=sflag, size = 0x8, scoped, tag = 'scoped memory for tpu_custom_call.1']
    #allocation5 [shape = 'u8[16384]{0}', space=vmem, size = 0x4000, scoped, tag = 'input window, operand 1, single buffered']
    #allocation6 [shape = 's32[1]{0}', space=sflag, size = 0x4, scoped, tag = 'scoped memory for tpu_custom_call.1']
    #allocation7 [shape = 'u8[16384]{0}', space=vmem, size = 0x4000, scoped, tag = 'input window, operand 3, single buffered']
    #allocation8 [shape = 'u8[16384]{0}', space=vmem, size = 0x4000, scoped, tag = 'input window, operand 4, single buffered']
    #allocation9 [shape = 's32[1]{0}', space=sflag, size = 0x4, scoped, tag = 'scoped memory for tpu_custom_call.1']
    #allocation10 [shape = 'u8[16384]{0}', space=vmem, size = 0x4000, scoped, tag = 'input window, operand 6, single buffered']
    #allocation11 [shape = 'u8[8192]{0}', space=vmem, size = 0x2000, scoped, tag = 'output window, operand 0']
    #allocation12 [shape = 'u8[8192]{0}', space=vmem, size = 0x2000, scoped, tag = 'output window, operand 1']
    #allocation13 [shape = 's32[2]{0}', space=sflag, size = 0x8, scoped, tag = 'scoped memory for tpu_custom_call.1']
    %15 = vsyncpa [#allocation3], 0
    %s16 = scalar_lea.sflag [#allocation3], 1
    %17 = vsyncpa %s16, 0
    %18 = vsyncpa [#allocation6], 0
    %19 = vsyncpa [#allocation9], 0
    %20 = vsyncpa [#allocation4], 0
    %s21 = scalar_lea.sflag [#allocation4], 1
    %22 = vsyncpa %s21, 0
    %23 = vsyncpa [#allocation13], 0
    %s24 = scalar_lea.sflag [#allocation13], 1
    %25 = vsyncpa %s24, 0
    loop: start=0, step=1, limit=4
    $region2: #{tpu_custom_call.1} parent=1 // loop_pre_header
      _
    $region3: #{tpu_custom_call.1} parent=1 // loop_header
      %s27 = sphi 0, %s31
      %p28 = scmp.ge.s32.totalorder %s27, 4
      %s37 = sphi 0, %s39
      %s40 = sphi 0, %s37
      %s41 = sphi 0, %s40
      %s57 = sphi 0, %s41
      %s61 = sphi 0, %s61
      %s63 = sphi 0, %s61
      %s64 = sphi 0, %s63
      %s78 = sphi 0, %s64
      %s82 = sphi 0, %s82
      %s84 = sphi 0, %s82
      %s85 = sphi 0, %s84
      %s99 = sphi 0, %s85
      %s103 = sphi 0, %s103
      %s105 = sphi 0, %s103
      %s106 = sphi 0, %s105
      %s120 = sphi 0, %s106
      %s124 = sphi 0, %s124
      %s126 = sphi 0, %s124
      %s127 = sphi 0, %s126
      %s141 = sphi 0, %s127
      %s145 = sphi 0, %s145
      %s147 = sphi 0, %s145
      %s148 = sphi 0, %s147
      %s162 = sphi 0, %s148
      %s166 = sphi 0, %s166
      %s168 = sphi 0, %s166
      %s169 = sphi 0, %s168
      %s183 = sphi 0, %s169
      %s187 = sphi 0, %s187
      %s189 = sphi 0, %s187
      %s190 = sphi 0, %s189
      %s204 = sphi 0, %s190
      %s210 = sphi 0, %s212
      %s213 = sphi 0, %s210
      %s214 = sphi 0, %s213
      %s230 = sphi 0, %s214
      %s236 = sphi 0, %s238
      %s239 = sphi 0, %s236
      %s240 = sphi 0, %s239
      %s256 = sphi 0, %s240
    $region4: #{tpu_custom_call.1} parent=1 // loop_header_branch
      %30 = sbr.rel (%p28) target = $region8
    $region5: #{tpu_custom_call.1} parent=1 // loop_body
      %s32 = ssub.s32 %s27, 1
      %s33 = ssub.s32 %s27, 2
      %s34 = sadd.s32 %s27, 1
      %s35 = ssub.s32 %s27, %s34
      %p36 = scmp.eq.s32.totalorder %s35, 0
      %s38 = sadd.s32 %s37, 1
      %s39 = scalar_select %p36, %s37, %s38
      %p42 = pneg %p36
      %p43 = scmp.eq.s32.totalorder %s27, 1
      %p44 = por %p42, %p43
      %p45 = scmp.ne.s32.totalorder %s37, %s40
      %p46 = scmp.eq.s32.totalorder %s27, 0
      %p47 = por %p45, %p46
      %p48 = scmp.ne.s32.totalorder %s37, %s40
      %p49 = scmp.eq.s32.totalorder %s32, 1
      %p50 = por %p48, %p49
      %p51 = scmp.ne.s32.totalorder %s40, %s41
      %p52 = scmp.eq.s32.totalorder %s32, 0
      %p53 = por %p51, %p52
      %p54 = scmp.ne.s32.totalorder %s40, %s41
      %p55 = scmp.eq.s32.totalorder %s33, 1
      %p56 = por %p54, %p55
      %p58 = scmp.ne.s32.totalorder %s41, %s57
      %p59 = scmp.eq.s32.totalorder %s33, 0
      %p60 = por %p58, %p59
      %s62 = sadd.s32 %s61, 1
      %p65 = scmp.eq.s32.totalorder %s27, 1
      %p66 = scmp.ne.s32.totalorder %s61, %s63
      %p67 = scmp.eq.s32.totalorder %s27, 0
      %p68 = por %p66, %p67
      %p69 = scmp.ne.s32.totalorder %s61, %s63
      %p70 = scmp.eq.s32.totalorder %s32, 1
      %p71 = por %p69, %p70
      %p72 = scmp.ne.s32.totalorder %s63, %s64
      %p73 = scmp.eq.s32.totalorder %s32, 0
      %p74 = por %p72, %p73
      %p75 = scmp.ne.s32.totalorder %s63, %s64
      %p76 = scmp.eq.s32.totalorder %s33, 1
      %p77 = por %p75, %p76
      %p79 = scmp.ne.s32.totalorder %s64, %s78
      %p80 = scmp.eq.s32.totalorder %s33, 0
      %p81 = por %p79, %p80
      %s83 = sadd.s32 %s82, 1
      %p86 = scmp.eq.s32.totalorder %s27, 1
      %p87 = scmp.ne.s32.totalorder %s82, %s84
      %p88 = scmp.eq.s32.totalorder %s27, 0
      %p89 = por %p87, %p88
      %p90 = scmp.ne.s32.totalorder %s82, %s84
      %p91 = scmp.eq.s32.totalorder %s32, 1
      %p92 = por %p90, %p91
      %p93 = scmp.ne.s32.totalorder %s84, %s85
      %p94 = scmp.eq.s32.totalorder %s32, 0
      %p95 = por %p93, %p94
      %p96 = scmp.ne.s32.totalorder %s84, %s85
      %p97 = scmp.eq.s32.totalorder %s33, 1
      %p98 = por %p96, %p97
      %p100 = scmp.ne.s32.totalorder %s85, %s99
      %p101 = scmp.eq.s32.totalorder %s33, 0
      %p102 = por %p100, %p101
      %s104 = sadd.s32 %s103, 1
      %p107 = scmp.eq.s32.totalorder %s27, 1
      %p108 = scmp.ne.s32.totalorder %s103, %s105
      %p109 = scmp.eq.s32.totalorder %s27, 0
      %p110 = por %p108, %p109
      %p111 = scmp.ne.s32.totalorder %s103, %s105
      %p112 = scmp.eq.s32.totalorder %s32, 1
      %p113 = por %p111, %p112
      %p114 = scmp.ne.s32.totalorder %s105, %s106
      %p115 = scmp.eq.s32.totalorder %s32, 0
      %p116 = por %p114, %p115
      %p117 = scmp.ne.s32.totalorder %s105, %s106
      %p118 = scmp.eq.s32.totalorder %s33, 1
      %p119 = por %p117, %p118
      %p121 = scmp.ne.s32.totalorder %s106, %s120
      %p122 = scmp.eq.s32.totalorder %s33, 0
      %p123 = por %p121, %p122
      %s125 = sadd.s32 %s124, 1
      %p128 = scmp.eq.s32.totalorder %s27, 1
      %p129 = scmp.ne.s32.totalorder %s124, %s126
      %p130 = scmp.eq.s32.totalorder %s27, 0
      %p131 = por %p129, %p130
      %p132 = scmp.ne.s32.totalorder %s124, %s126
      %p133 = scmp.eq.s32.totalorder %s32, 1
      %p134 = por %p132, %p133
      %p135 = scmp.ne.s32.totalorder %s126, %s127
      %p136 = scmp.eq.s32.totalorder %s32, 0
      %p137 = por %p135, %p136
      %p138 = scmp.ne.s32.totalorder %s126, %s127
      %p139 = scmp.eq.s32.totalorder %s33, 1
      %p140 = por %p138, %p139
      %p142 = scmp.ne.s32.totalorder %s127, %s141
      %p143 = scmp.eq.s32.totalorder %s33, 0
      %p144 = por %p142, %p143
      %s146 = sadd.s32 %s145, 1
      %p149 = scmp.eq.s32.totalorder %s27, 1
      %p150 = scmp.ne.s32.totalorder %s145, %s147
      %p151 = scmp.eq.s32.totalorder %s27, 0
      %p152 = por %p150, %p151
      %p153 = scmp.ne.s32.totalorder %s145, %s147
      %p154 = scmp.eq.s32.totalorder %s32, 1
      %p155 = por %p153, %p154
      %p156 = scmp.ne.s32.totalorder %s147, %s148
      %p157 = scmp.eq.s32.totalorder %s32, 0
      %p158 = por %p156, %p157
      %p159 = scmp.ne.s32.totalorder %s147, %s148
      %p160 = scmp.eq.s32.totalorder %s33, 1
      %p161 = por %p159, %p160
      %p163 = scmp.ne.s32.totalorder %s148, %s162
      %p164 = scmp.eq.s32.totalorder %s33, 0
      %p165 = por %p163, %p164
      %s167 = sadd.s32 %s166, 1
      %p170 = scmp.eq.s32.totalorder %s27, 1
      %p171 = scmp.ne.s32.totalorder %s166, %s168
      %p172 = scmp.eq.s32.totalorder %s27, 0
      %p173 = por %p171, %p172
      %p174 = scmp.ne.s32.totalorder %s166, %s168
      %p175 = scmp.eq.s32.totalorder %s32, 1
      %p176 = por %p174, %p175
      %p177 = scmp.ne.s32.totalorder %s168, %s169
      %p178 = scmp.eq.s32.totalorder %s32, 0
      %p179 = por %p177, %p178
      %p180 = scmp.ne.s32.totalorder %s168, %s169
      %p181 = scmp.eq.s32.totalorder %s33, 1
      %p182 = por %p180, %p181
      %p184 = scmp.ne.s32.totalorder %s169, %s183
      %p185 = scmp.eq.s32.totalorder %s33, 0
      %p186 = por %p184, %p185
      %s188 = sadd.s32 %s187, 1
      %p191 = scmp.eq.s32.totalorder %s27, 1
      %p192 = scmp.ne.s32.totalorder %s187, %s189
      %p193 = scmp.eq.s32.totalorder %s27, 0
      %p194 = por %p192, %p193
      %p195 = scmp.ne.s32.totalorder %s187, %s189
      %p196 = scmp.eq.s32.totalorder %s32, 1
      %p197 = por %p195, %p196
      %p198 = scmp.ne.s32.totalorder %s189, %s190
      %p199 = scmp.eq.s32.totalorder %s32, 0
      %p200 = por %p198, %p199
      %p201 = scmp.ne.s32.totalorder %s189, %s190
      %p202 = scmp.eq.s32.totalorder %s33, 1
      %p203 = por %p201, %p202
      %p205 = scmp.ne.s32.totalorder %s190, %s204
      %p206 = scmp.eq.s32.totalorder %s33, 0
      %p207 = por %p205, %p206
      %s208 = ssub.s32 %s27, %s34
      %p209 = scmp.eq.s32.totalorder %s208, 0
      %s211 = sadd.s32 %s210, 1
      %s212 = scalar_select %p209, %s210, %s211
      %p215 = pneg %p209
      %p216 = scmp.eq.s32.totalorder %s27, 1
      %p217 = por %p215, %p216
      %p218 = scmp.ne.s32.totalorder %s210, %s213
      %p219 = scmp.eq.s32.totalorder %s27, 0
      %p220 = por %p218, %p219
      %p221 = scmp.ne.s32.totalorder %s210, %s213
      %p222 = scmp.eq.s32.totalorder %s32, 1
      %p223 = por %p221, %p222
      %p224 = scmp.ne.s32.totalorder %s213, %s214
      %p225 = scmp.eq.s32.totalorder %s32, 0
      %p226 = por %p224, %p225
      %p227 = scmp.ne.s32.totalorder %s213, %s214
      %p228 = scmp.eq.s32.totalorder %s33, 1
      %p229 = por %p227, %p228
      %p231 = scmp.ne.s32.totalorder %s214, %s230
      %p232 = scmp.eq.s32.totalorder %s33, 0
      %p233 = por %p231, %p232
      %s234 = ssub.s32 %s27, %s34
      %p235 = scmp.eq.s32.totalorder %s234, 0
      %s237 = sadd.s32 %s236, 1
      %s238 = scalar_select %p235, %s236, %s237
      %p241 = pneg %p235
      %p242 = scmp.eq.s32.totalorder %s27, 1
      %p243 = por %p241, %p242
      %p244 = scmp.ne.s32.totalorder %s236, %s239
      %p245 = scmp.eq.s32.totalorder %s27, 0
      %p246 = por %p244, %p245
      %p247 = scmp.ne.s32.totalorder %s236, %s239
      %p248 = scmp.eq.s32.totalorder %s32, 1
      %p249 = por %p247, %p248
      %p250 = scmp.ne.s32.totalorder %s239, %s240
      %p251 = scmp.eq.s32.totalorder %s32, 0
      %p252 = por %p250, %p251
      %p253 = scmp.ne.s32.totalorder %s239, %s240
      %p254 = scmp.eq.s32.totalorder %s33, 1
      %p255 = por %p253, %p254
      %p257 = scmp.ne.s32.totalorder %s240, %s256
      %p258 = scmp.eq.s32.totalorder %s33, 0
      %p259 = por %p257, %p258
      %p260 = scmp.le.s32.totalorder 1, %s27
      %p261 = scmp.lt.s32.totalorder %s27, 3
      %p262 = pnand %p260, %p261
      %p263 = pneg %p262
      // Predicated region
      $region9: #{tpu_custom_call.1} parent=5 // pred_check
        _
      $region10: #{tpu_custom_call.1} parent=5 // pred_check_branch
        %265 = sbr.rel (%p262) target = $region12
      $region11: #{tpu_custom_call.1} parent=5 // pred_region
        %s266 = ssub.s32 %s27, 1
        // Predicated region
        $region13: #{tpu_custom_call.1} parent=11 // pred_check
          %p267 = pneg %p74
        $region14: #{tpu_custom_call.1} parent=11 // pred_check_branch
          %269 = sbr.rel (%p267) target = $region16
        $region15: #{tpu_custom_call.1} parent=11 // pred_region
          %s271 = ssub.s32 512, 512
          %272 = vsyncadd [#allocation6], %s271
          %s273 = sshll.u32 [#allocation5], 4
          %s274 = int_to_ptr.vmem [resolvable:$true] %s273
          %279 = dma.hbm_to_vmem [thread:$0]  %s1, 512, %s274, [#allocation6], 128, 128, 8
        $region16: #{tpu_custom_call.1} parent=11 // pred_fallthru
          _
        // Predicated region
        $region17: #{tpu_custom_call.1} parent=11 // pred_check
          %p280 = pneg %p95
        $region18: #{tpu_custom_call.1} parent=11 // pred_check_branch
          %282 = sbr.rel (%p280) target = $region20
        $region19: #{tpu_custom_call.1} parent=11 // pred_region
          _
        $region20: #{tpu_custom_call.1} parent=11 // pred_fallthru
          _
        // Predicated region
        $region21: #{tpu_custom_call.1} parent=11 // pred_check
          %p283 = pneg %p116
        $region22: #{tpu_custom_call.1} parent=11 // pred_check_branch
          %285 = sbr.rel (%p283) target = $region24
        $region23: #{tpu_custom_call.1} parent=11 // pred_region
          %s287 = ssub.s32 512, 512
          %288 = vsyncadd [#allocation6], %s287
          %s289 = sshll.u32 [#allocation7], 4
          %s290 = int_to_ptr.vmem [resolvable:$true] %s289
          %295 = dma.hbm_to_vmem [thread:$0]  %s3, 512, %s290, [#allocation6], 128, 128, 8
        $region24: #{tpu_custom_call.1} parent=11 // pred_fallthru
          _
        // Predicated region
        $region25: #{tpu_custom_call.1} parent=11 // pred_check
          %p296 = pneg %p137
        $region26: #{tpu_custom_call.1} parent=11 // pred_check_branch
          %298 = sbr.rel (%p296) target = $region28
        $region27: #{tpu_custom_call.1} parent=11 // pred_region
          %s300 = ssub.s32 512, 512
          %301 = vsyncadd [#allocation9], %s300
          %s302 = sshll.u32 [#allocation8], 4
          %s303 = int_to_ptr.vmem [resolvable:$true] %s302
          %308 = dma.hbm_to_vmem [thread:$0]  %s4, 512, %s303, [#allocation9], 128, 128, 8
        $region28: #{tpu_custom_call.1} parent=11 // pred_fallthru
          _
        // Predicated region
        $region29: #{tpu_custom_call.1} parent=11 // pred_check
          %p309 = pneg %p158
        $region30: #{tpu_custom_call.1} parent=11 // pred_check_branch
          %311 = sbr.rel (%p309) target = $region32
        $region31: #{tpu_custom_call.1} parent=11 // pred_region
          _
        $region32: #{tpu_custom_call.1} parent=11 // pred_fallthru
          _
        // Predicated region
        $region33: #{tpu_custom_call.1} parent=11 // pred_check
          %p312 = pneg %p179
        $region34: #{tpu_custom_call.1} parent=11 // pred_check_branch
          %314 = sbr.rel (%p312) target = $region36
        $region35: #{tpu_custom_call.1} parent=11 // pred_region
          %s316 = ssub.s32 512, 512
          %317 = vsyncadd [#allocation9], %s316
          %s318 = sshll.u32 [#allocation10], 4
          %s319 = int_to_ptr.vmem [resolvable:$true] %s318
          %324 = dma.hbm_to_vmem [thread:$0]  %s6, 512, %s319, [#allocation9], 128, 128, 8
        $region36: #{tpu_custom_call.1} parent=11 // pred_fallthru
          _
        // Predicated region
        $region37: #{tpu_custom_call.1} parent=11 // pred_check
          %p325 = pneg %p200
        $region38: #{tpu_custom_call.1} parent=11 // pred_check_branch
          %327 = sbr.rel (%p325) target = $region40
        $region39: #{tpu_custom_call.1} parent=11 // pred_region
          _
        $region40: #{tpu_custom_call.1} parent=11 // pred_fallthru
          _
      $region12: #{tpu_custom_call.1} parent=5 // pred_fallthru
        _
      %p328 = scmp.lt.s32.totalorder %s27, 2
      // Predicated region
      $region41: #{tpu_custom_call.1} parent=5 // pred_check
        %p329 = pneg %p328
      $region42: #{tpu_custom_call.1} parent=5 // pred_check_branch
        %331 = sbr.rel (%p329) target = $region44
      $region43: #{tpu_custom_call.1} parent=5 // pred_region
        // Predicated region
        $region45: #{tpu_custom_call.1} parent=43 // pred_check
          %p332 = pneg %p47
        $region46: #{tpu_custom_call.1} parent=43 // pred_check_branch
          %334 = sbr.rel (%p332) target = $region48
        $region47: #{tpu_custom_call.1} parent=43 // pred_region
          %s335 = sand.u32 %s37, 1
          %s336 = scalar_lea.sflag [#allocation3], %s335
          %s337 = sand.u32 %s37, 1
          %s338 = smul.addr %s337, 8
          %s339 = scalar_lea.vmem [#allocation2], %s338
          %s341 = ssub.s32 128, 128
          %342 = vsyncadd %s336, %s341
          %s343 = smul.addr %s27, 128
          %s344 = scalar_lea.hbm %s0, %s343
          %s346 = sshll.u32 %s339, 4
          %s347 = int_to_ptr.vmem [resolvable:$true] %s346
          %349 = dma.hbm_to_vmem [thread:$0]  %s344, 128, %s347, %s336
        $region48: #{tpu_custom_call.1} parent=43 // pred_fallthru
          _
      $region44: #{tpu_custom_call.1} parent=5 // pred_fallthru
        _
      %p350 = scmp.le.s32.totalorder 1, %s27
      %p351 = scmp.lt.s32.totalorder %s27, 3
      %p352 = pnand %p350, %p351
      %p353 = pneg %p352
      // Predicated region
      $region49: #{tpu_custom_call.1} parent=5 // pred_check
        _
      $region50: #{tpu_custom_call.1} parent=5 // pred_check_branch
        %355 = sbr.rel (%p352) target = $region52
      $region51: #{tpu_custom_call.1} parent=5 // pred_region
        %s356 = ssub.s32 %s27, 1
        %s357 = sand.u32 %s40, 1
        %s358 = scalar_lea.sflag [#allocation3], %s357
        %s359 = sand.u32 %s40, 1
        %s360 = smul.addr %s359, 8
        %s361 = scalar_lea.vmem [#allocation2], %s360
        // Predicated region
        $region53: #{tpu_custom_call.1} parent=51 // pred_check
          %p362 = pneg %p53
        $region54: #{tpu_custom_call.1} parent=51 // pred_check_branch
          %364 = sbr.rel (%p362) target = $region56
        $region55: #{tpu_custom_call.1} parent=51 // pred_region
          %365 = dma.done %s358, 128
        $region56: #{tpu_custom_call.1} parent=51 // pred_fallthru
          _
        // Predicated region
        $region57: #{tpu_custom_call.1} parent=51 // pred_check
          %p366 = pneg %p74
        $region58: #{tpu_custom_call.1} parent=51 // pred_check_branch
          %368 = sbr.rel (%p366) target = $region60
        $region59: #{tpu_custom_call.1} parent=51 // pred_region
          %369 = dma.done [#allocation6], 512
        $region60: #{tpu_custom_call.1} parent=51 // pred_fallthru
          _
        // Predicated region
        $region61: #{tpu_custom_call.1} parent=51 // pred_check
          %p370 = pneg %p116
        $region62: #{tpu_custom_call.1} parent=51 // pred_check_branch
          %372 = sbr.rel (%p370) target = $region64
        $region63: #{tpu_custom_call.1} parent=51 // pred_region
          %373 = dma.done [#allocation6], 512
        $region64: #{tpu_custom_call.1} parent=51 // pred_fallthru
          _
        // Predicated region
        $region65: #{tpu_custom_call.1} parent=51 // pred_check
          %p374 = pneg %p137
        $region66: #{tpu_custom_call.1} parent=51 // pred_check_branch
          %376 = sbr.rel (%p374) target = $region68
        $region67: #{tpu_custom_call.1} parent=51 // pred_region
          %377 = dma.done [#allocation9], 512
        $region68: #{tpu_custom_call.1} parent=51 // pred_fallthru
          _
        // Predicated region
        $region69: #{tpu_custom_call.1} parent=51 // pred_check
          %p378 = pneg %p179
        $region70: #{tpu_custom_call.1} parent=51 // pred_check_branch
          %380 = sbr.rel (%p378) target = $region72
        $region71: #{tpu_custom_call.1} parent=51 // pred_region
          %381 = dma.done [#allocation9], 512
        $region72: #{tpu_custom_call.1} parent=51 // pred_fallthru
          _
        %s382 = sand.u32 %s40, 1
        %s383 = scalar_lea.sflag [#allocation3], %s382
        %s384 = sand.u32 %s40, 1
        %s385 = smul.addr %s384, 8
        %s386 = scalar_lea.vmem [#allocation2], %s385
        %p387 = pneg %p53
        %p388 = pneg %p50
        %p389 = pneg %p74
        %p390 = pneg %p71
        %p391 = pneg %p95
        %p392 = pneg %p92
        %p393 = pneg %p116
        %p394 = pneg %p113
        %p395 = pneg %p137
        %p396 = pneg %p134
        %p397 = pneg %p158
        %p398 = pneg %p155
        %p399 = pneg %p179
        %p400 = pneg %p176
        %p401 = pneg %p200
        %p402 = pneg %p197
        %p403 = pneg %p226
        %p404 = pneg %p223
        %s405 = sand.u32 %s213, 1
        %s406 = scalar_lea.sflag [#allocation4], %s405
        %s407 = sand.u32 %s213, 1
        %s408 = smul.addr %s407, 8
        %s409 = scalar_lea.vmem [#allocation11], %s408
        %p410 = pneg %p252
        %p411 = pneg %p249
        %s412 = sand.u32 %s239, 1
        %s413 = scalar_lea.sflag [#allocation13], %s412
        %s414 = sand.u32 %s239, 1
        %s415 = smul.addr %s414, 8
        %s416 = scalar_lea.vmem [#allocation12], %s415
        %v417 = vld [vmem:[%s361] sm:$0xff]
        %v418 = vld [vmem:[%s7] sm:$0x3f]
        %v419 = vld [vmem:[#allocation5] sm:$0xff]
        %v420 = vld [vmem:[#allocation5 + $0x8] sm:$0xff]
        %v421 = vld [vmem:[#allocation5 + $0x10] sm:$0xff]
        %v422 = vld [vmem:[#allocation5 + $0x18] sm:$0xff]
        %v423 = vld [vmem:[%s2] sm:$0x1]
        %v425 = vlaneseq
        %v426 = vshrl.u32 %v425, 7
        %v427 = vsub.s32 0, %v426
        %v428 = vrot.slane %v423, %v427
        %vm430 = vcmask 261120
        %v432 = vsel %vm430, %v417, 0
        %434 = vmatprep.subr.mxu0 0.0
        %435 = vmatpush1.msra.mxu0 %v419
        %436 = vmatprep.subr.mxu0 0.0
        %437 = vmatpush1.msra.mxu0 %v420
        %438 = vmatprep.subr.mxu0 0.0
        %439 = vmatpush1.msra.mxu0 %v421
        %440 = vmatprep.subr.mxu0 0.0
        %441 = vmatpush1.msra.mxu0 %v422
        %442 = vmatprep.subr.mxu0 0.0
        %443 = vmatpush1.msra.mxu0 0.0
        %444 = vmatprep.subr.mxu0 0.0
        %445 = vmatpush1.msra.mxu0 0.0
        %446 = vmatprep.subr.mxu0 0.0
        %447 = vmatpush1.msra.mxu0 0.0
        %448 = vmatprep.subr.mxu0 0.0
        %449 = vmatpush1.msra.mxu0 0.0
        %450 = vmatprep.subr.mxu0 0.0
        %451 = vmatpush1.msra.mxu0 0.0
        %452 = vmatprep.subr.mxu0 0.0
        %453 = vmatpush1.msra.mxu0 0.0
        %454 = vmatprep.subr.mxu0 0.0
        %455 = vmatpush1.msra.mxu0 0.0
        %456 = vmatprep.subr.mxu0 0.0
        %457 = vmatpush1.msra.mxu0 0.0
        %458 = vmatprep.subr.mxu0 0.0
        %459 = vmatpush1.msra.mxu0 0.0
        %460 = vmatprep.subr.mxu0 0.0
        %461 = vmatpush1.msra.mxu0 0.0
        %462 = vmatprep.subr.mxu0 0.0
        %463 = vmatpush1.msra.mxu0 0.0
        %464 = vmatprep.subr.mxu0 0.0
        %465 = vmatpush1.msra.mxu0 0.0
        %466 = vmatprep.subr.mxu0 0.0
        %467 = vmatpush1.msra.mxu0 0.0
        %468 = vmatprep.subr.mxu0 0.0
        %469 = vmatpush1.msra.mxu0 0.0
        %470 = vmatprep.subr.mxu0 0.0
        %471 = vmatpush1.msra.mxu0 0.0
        %472 = vmatprep.subr.mxu0 0.0
        %473 = vmatpush1.msra.mxu0 0.0
        %474 = vmatprep.subr.mxu0 0.0
        %475 = vmatpush1.msra.mxu0 0.0
        %476 = vmatprep.subr.mxu0 0.0
        %477 = vmatpush1.msra.mxu0 0.0
        %478 = vmatprep.subr.mxu0 0.0
        %479 = vmatpush1.msra.mxu0 0.0
        %480 = vmatprep.subr.mxu0 0.0
        %481 = vmatpush1.msra.mxu0 0.0
        %482 = vmatprep.subr.mxu0 0.0
        %483 = vmatpush1.msra.mxu0 0.0
        %484 = vmatprep.subr.mxu0 0.0
        %485 = vmatpush1.msra.mxu0 0.0
        %486 = vmatprep.subr.mxu0 0.0
        %487 = vmatpush1.msra.mxu0 0.0
        %488 = vmatprep.subr.mxu0 0.0
        %489 = vmatpush1.msra.mxu0 0.0
        %490 = vmatprep.subr.mxu0 0.0
        %491 = vmatpush1.msra.mxu0 0.0
        %492 = vmatprep.subr.mxu0 0.0
        %493 = vmatpush1.msra.mxu0 0.0
        %494 = vmatprep.subr.mxu0 0.0
        %495 = vmatpush1.msra.mxu0 0.0
        %496 = vmatprep.subr.mxu0 0.0
        %497 = vmatpush1.msra.mxu0 0.0
        %498 = vmatprep.mubr.f32.mxu0 0.0
        %499 = vmatmul.mubr.f32.gmra.mrb[0].mxu0 %v432
        %v500 = vpop.f32.mrb[0].mxu0
        %v501 = vadd.f32 %v428, %v500
        %v502 = vpop.f32.mrb[0].mxu0
        %503 = vdwg.mxu0
        %505 = vrot.lane.b32.xlu0 %v501, 120
        %v506 = vpop.permute.xlu0 %505
        %507 = vrot.lane.b32.xlu0 %v501, 112
        %v508 = vpop.permute.xlu0 %507
        %509 = vrot.lane.b32.xlu0 %v501, 104
        %v510 = vpop.permute.xlu0 %509
        %511 = vrot.lane.b32.xlu0 %v501, 96
        %v512 = vpop.permute.xlu0 %511
        %vm513 = vcmask 64512
        %v514 = vsel %vm513, %v501, 0
        %v516 = vsel %vm513, %v512, 0
        %518 = vmatprep.subr.mxu0 0.0
        %519 = vmatpush1.xpose.msra.mxu0 %v516
        %520 = vmatprep.subr.mxu0 0.0
        %521 = vmatpush1.xpose.msra.mxu0 0.0
        %522 = vmatprep.subr.mxu0 0.0
        %523 = vmatpush1.xpose.msra.mxu0 0.0
        %524 = vmatprep.subr.mxu0 0.0
        %525 = vmatpush1.xpose.msra.mxu0 0.0
        %526 = vmatprep.subr.mxu0 0.0
        %527 = vmatpush1.xpose.msra.mxu0 0.0
        %528 = vmatprep.subr.mxu0 0.0
        %529 = vmatpush1.xpose.msra.mxu0 0.0
        %530 = vmatprep.subr.mxu0 0.0
        %531 = vmatpush1.xpose.msra.mxu0 0.0
        %532 = vmatprep.subr.mxu0 0.0
        %533 = vmatpush1.xpose.msra.mxu0 0.0
        %534 = vmatprep.subr.mxu0 0.0
        %535 = vmatpush1.xpose.msra.mxu0 0.0
        %536 = vmatprep.subr.mxu0 0.0
        %537 = vmatpush1.xpose.msra.mxu0 0.0
        %538 = vmatprep.subr.mxu0 0.0
        %539 = vmatpush1.xpose.msra.mxu0 0.0
        %540 = vmatprep.subr.mxu0 0.0
        %541 = vmatpush1.xpose.msra.mxu0 0.0
        %542 = vmatprep.subr.mxu0 0.0
        %543 = vmatpush1.xpose.msra.mxu0 0.0
        %544 = vmatprep.subr.mxu0 0.0
        %545 = vmatpush1.xpose.msra.mxu0 0.0
        %546 = vmatprep.subr.mxu0 0.0
        %547 = vmatpush1.xpose.msra.mxu0 0.0
        %548 = vmatprep.subr.mxu0 0.0
        %549 = vmatpush1.xpose.msra.mxu0 0.0
        %550 = vmatprep.subr.mxu0 0.0
        %551 = vmatpush1.xpose.msra.mxu0 0.0
        %552 = vmatprep.subr.mxu0 0.0
        %553 = vmatpush1.xpose.msra.mxu0 0.0
        %554 = vmatprep.subr.mxu0 0.0
        %555 = vmatpush1.xpose.msra.mxu0 0.0
        %556 = vmatprep.subr.mxu0 0.0
        %557 = vmatpush1.xpose.msra.mxu0 0.0
        %558 = vmatprep.subr.mxu0 0.0
        %559 = vmatpush1.xpose.msra.mxu0 0.0
        %560 = vmatprep.subr.mxu0 0.0
        %561 = vmatpush1.xpose.msra.mxu0 0.0
        %562 = vmatprep.subr.mxu0 0.0
        %563 = vmatpush1.xpose.msra.mxu0 0.0
        %564 = vmatprep.subr.mxu0 0.0
        %565 = vmatpush1.xpose.msra.mxu0 0.0
        %566 = vmatprep.subr.mxu0 0.0
        %567 = vmatpush1.xpose.msra.mxu0 0.0
        %568 = vmatprep.subr.mxu0 0.0
        %569 = vmatpush1.xpose.msra.mxu0 0.0
        %570 = vmatprep.subr.mxu0 0.0
        %571 = vmatpush1.xpose.msra.mxu0 0.0
        %572 = vmatprep.subr.mxu0 0.0
        %573 = vmatpush1.xpose.msra.mxu0 0.0
        %574 = vmatprep.subr.mxu0 0.0
        %575 = vmatpush1.xpose.msra.mxu0 0.0
        %576 = vmatprep.subr.mxu0 0.0
        %577 = vmatpush1.xpose.msra.mxu0 0.0
        %578 = vmatprep.subr.mxu0 0.0
        %579 = vmatpush1.xpose.msra.mxu0 0.0
        %580 = vmatprep.subr.mxu0 0.0
        %581 = vmatpush1.xpose.msra.mxu0 0.0
        %582 = vmatprep.mubr.f32.mxu0 0.0
        %583 = vmatmul.mubr.f32.gmra.mrb[0].mxu0 %v514
        %v584 = vpop.f32.mrb[0].mxu0
        %v585 = vadd.f32 0.0, %v584
        %v586 = vpop.f32.mrb[0].mxu0
        %587 = vdwg.mxu0
        %588 = vrot.lane.b32.xlu0 %v506, 96
        %v589 = vpop.permute.xlu0 %588
        %v590 = vsel %vm513, %v506, 0
        %v592 = vsel %vm513, %v589, 0
        %594 = vmatprep.subr.mxu0 0.0
        %595 = vmatpush1.xpose.msra.mxu0 %v592
        %596 = vmatprep.subr.mxu0 0.0
        %597 = vmatpush1.xpose.msra.mxu0 0.0
        %598 = vmatprep.subr.mxu0 0.0
        %599 = vmatpush1.xpose.msra.mxu0 0.0
        %600 = vmatprep.subr.mxu0 0.0
        %601 = vmatpush1.xpose.msra.mxu0 0.0
        %602 = vmatprep.subr.mxu0 0.0
        %603 = vmatpush1.xpose.msra.mxu0 0.0
        %604 = vmatprep.subr.mxu0 0.0
        %605 = vmatpush1.xpose.msra.mxu0 0.0
        %606 = vmatprep.subr.mxu0 0.0
        %607 = vmatpush1.xpose.msra.mxu0 0.0
        %608 = vmatprep.subr.mxu0 0.0
        %609 = vmatpush1.xpose.msra.mxu0 0.0
        %610 = vmatprep.subr.mxu0 0.0
        %611 = vmatpush1.xpose.msra.mxu0 0.0
        %612 = vmatprep.subr.mxu0 0.0
        %613 = vmatpush1.xpose.msra.mxu0 0.0
        %614 = vmatprep.subr.mxu0 0.0
        %615 = vmatpush1.xpose.msra.mxu0 0.0
        %616 = vmatprep.subr.mxu0 0.0
        %617 = vmatpush1.xpose.msra.mxu0 0.0
        %618 = vmatprep.subr.mxu0 0.0
        %619 = vmatpush1.xpose.msra.mxu0 0.0
        %620 = vmatprep.subr.mxu0 0.0
        %621 = vmatpush1.xpose.msra.mxu0 0.0
        %622 = vmatprep.subr.mxu0 0.0
        %623 = vmatpush1.xpose.msra.mxu0 0.0
        %624 = vmatprep.subr.mxu0 0.0
        %625 = vmatpush1.xpose.msra.mxu0 0.0
        %626 = vmatprep.subr.mxu0 0.0
        %627 = vmatpush1.xpose.msra.mxu0 0.0
        %628 = vmatprep.subr.mxu0 0.0
        %629 = vmatpush1.xpose.msra.mxu0 0.0
        %630 = vmatprep.subr.mxu0 0.0
        %631 = vmatpush1.xpose.msra.mxu0 0.0
        %632 = vmatprep.subr.mxu0 0.0
        %633 = vmatpush1.xpose.msra.mxu0 0.0
        %634 = vmatprep.subr.mxu0 0.0
        %635 = vmatpush1.xpose.msra.mxu0 0.0
        %636 = vmatprep.subr.mxu0 0.0
        %637 = vmatpush1.xpose.msra.mxu0 0.0
        %638 = vmatprep.subr.mxu0 0.0
        %639 = vmatpush1.xpose.msra.mxu0 0.0
        %640 = vmatprep.subr.mxu0 0.0
        %641 = vmatpush1.xpose.msra.mxu0 0.0
        %642 = vmatprep.subr.mxu0 0.0
        %643 = vmatpush1.xpose.msra.mxu0 0.0
        %644 = vmatprep.subr.mxu0 0.0
        %645 = vmatpush1.xpose.msra.mxu0 0.0
        %646 = vmatprep.subr.mxu0 0.0
        %647 = vmatpush1.xpose.msra.mxu0 0.0
        %648 = vmatprep.subr.mxu0 0.0
        %649 = vmatpush1.xpose.msra.mxu0 0.0
        %650 = vmatprep.subr.mxu0 0.0
        %651 = vmatpush1.xpose.msra.mxu0 0.0
        %652 = vmatprep.subr.mxu0 0.0
        %653 = vmatpush1.xpose.msra.mxu0 0.0
        %654 = vmatprep.subr.mxu0 0.0
        %655 = vmatpush1.xpose.msra.mxu0 0.0
        %656 = vmatprep.subr.mxu0 0.0
        %657 = vmatpush1.xpose.msra.mxu0 0.0
        %658 = vmatprep.mubr.f32.mxu0 0.0
        %659 = vmatmul.mubr.f32.gmra.mrb[0].mxu0 %v590
        %v660 = vpop.f32.mrb[0].mxu0
        %v661 = vadd.f32 0.0, %v660
        %v662 = vpop.f32.mrb[0].mxu0
        %663 = vdwg.mxu0
        %664 = vrot.lane.b32.xlu0 %v508, 96
        %v665 = vpop.permute.xlu0 %664
        %v666 = vsel %vm513, %v508, 0
        %v668 = vsel %vm513, %v665, 0
        %670 = vmatprep.subr.mxu0 0.0
        %671 = vmatpush1.xpose.msra.mxu0 %v668
        %672 = vmatprep.subr.mxu0 0.0
        %673 = vmatpush1.xpose.msra.mxu0 0.0
        %674 = vmatprep.subr.mxu0 0.0
        %675 = vmatpush1.xpose.msra.mxu0 0.0
        %676 = vmatprep.subr.mxu0 0.0
        %677 = vmatpush1.xpose.msra.mxu0 0.0
        %678 = vmatprep.subr.mxu0 0.0
        %679 = vmatpush1.xpose.msra.mxu0 0.0
        %680 = vmatprep.subr.mxu0 0.0
        %681 = vmatpush1.xpose.msra.mxu0 0.0
        %682 = vmatprep.subr.mxu0 0.0
        %683 = vmatpush1.xpose.msra.mxu0 0.0
        %684 = vmatprep.subr.mxu0 0.0
        %685 = vmatpush1.xpose.msra.mxu0 0.0
        %686 = vmatprep.subr.mxu0 0.0
        %687 = vmatpush1.xpose.msra.mxu0 0.0
        %688 = vmatprep.subr.mxu0 0.0
        %689 = vmatpush1.xpose.msra.mxu0 0.0
        %690 = vmatprep.subr.mxu0 0.0
        %691 = vmatpush1.xpose.msra.mxu0 0.0
        %692 = vmatprep.subr.mxu0 0.0
        %693 = vmatpush1.xpose.msra.mxu0 0.0
        %694 = vmatprep.subr.mxu0 0.0
        %695 = vmatpush1.xpose.msra.mxu0 0.0
        %696 = vmatprep.subr.mxu0 0.0
        %697 = vmatpush1.xpose.msra.mxu0 0.0
        %698 = vmatprep.subr.mxu0 0.0
        %699 = vmatpush1.xpose.msra.mxu0 0.0
        %700 = vmatprep.subr.mxu0 0.0
        %701 = vmatpush1.xpose.msra.mxu0 0.0
        %702 = vmatprep.subr.mxu0 0.0
        %703 = vmatpush1.xpose.msra.mxu0 0.0
        %704 = vmatprep.subr.mxu0 0.0
        %705 = vmatpush1.xpose.msra.mxu0 0.0
        %706 = vmatprep.subr.mxu0 0.0
        %707 = vmatpush1.xpose.msra.mxu0 0.0
        %708 = vmatprep.subr.mxu0 0.0
        %709 = vmatpush1.xpose.msra.mxu0 0.0
        %710 = vmatprep.subr.mxu0 0.0
        %711 = vmatpush1.xpose.msra.mxu0 0.0
        %712 = vmatprep.subr.mxu0 0.0
        %713 = vmatpush1.xpose.msra.mxu0 0.0
        %714 = vmatprep.subr.mxu0 0.0
        %715 = vmatpush1.xpose.msra.mxu0 0.0
        %716 = vmatprep.subr.mxu0 0.0
        %717 = vmatpush1.xpose.msra.mxu0 0.0
        %718 = vmatprep.subr.mxu0 0.0
        %719 = vmatpush1.xpose.msra.mxu0 0.0
        %720 = vmatprep.subr.mxu0 0.0
        %721 = vmatpush1.xpose.msra.mxu0 0.0
        %722 = vmatprep.subr.mxu0 0.0
        %723 = vmatpush1.xpose.msra.mxu0 0.0
        %724 = vmatprep.subr.mxu0 0.0
        %725 = vmatpush1.xpose.msra.mxu0 0.0
        %726 = vmatprep.subr.mxu0 0.0
        %727 = vmatpush1.xpose.msra.mxu0 0.0
        %728 = vmatprep.subr.mxu0 0.0
        %729 = vmatpush1.xpose.msra.mxu0 0.0
        %730 = vmatprep.subr.mxu0 0.0
        %731 = vmatpush1.xpose.msra.mxu0 0.0
        %732 = vmatprep.subr.mxu0 0.0
        %733 = vmatpush1.xpose.msra.mxu0 0.0
        %734 = vmatprep.mubr.f32.mxu0 0.0
        %735 = vmatmul.mubr.f32.gmra.mrb[0].mxu0 %v666
        %v736 = vpop.f32.mrb[0].mxu0
        %v737 = vadd.f32 0.0, %v736
        %v738 = vpop.f32.mrb[0].mxu0
        %739 = vdwg.mxu0
        %740 = vrot.lane.b32.xlu0 %v510, 96
        %v741 = vpop.permute.xlu0 %740
        %v742 = vsel %vm513, %v510, 0
        %v744 = vsel %vm513, %v741, 0
        %746 = vmatprep.subr.mxu0 0.0
        %747 = vmatpush1.xpose.msra.mxu0 %v744
        %748 = vmatprep.subr.mxu0 0.0
        %749 = vmatpush1.xpose.msra.mxu0 0.0
        %750 = vmatprep.subr.mxu0 0.0
        %751 = vmatpush1.xpose.msra.mxu0 0.0
        %752 = vmatprep.subr.mxu0 0.0
        %753 = vmatpush1.xpose.msra.mxu0 0.0
        %754 = vmatprep.subr.mxu0 0.0
        %755 = vmatpush1.xpose.msra.mxu0 0.0
        %756 = vmatprep.subr.mxu0 0.0
        %757 = vmatpush1.xpose.msra.mxu0 0.0
        %758 = vmatprep.subr.mxu0 0.0
        %759 = vmatpush1.xpose.msra.mxu0 0.0
        %760 = vmatprep.subr.mxu0 0.0
        %761 = vmatpush1.xpose.msra.mxu0 0.0
        %762 = vmatprep.subr.mxu0 0.0
        %763 = vmatpush1.xpose.msra.mxu0 0.0
        %764 = vmatprep.subr.mxu0 0.0
        %765 = vmatpush1.xpose.msra.mxu0 0.0
        %766 = vmatprep.subr.mxu0 0.0
        %767 = vmatpush1.xpose.msra.mxu0 0.0
        %768 = vmatprep.subr.mxu0 0.0
        %769 = vmatpush1.xpose.msra.mxu0 0.0
        %770 = vmatprep.subr.mxu0 0.0
        %771 = vmatpush1.xpose.msra.mxu0 0.0
        %772 = vmatprep.subr.mxu0 0.0
        %773 = vmatpush1.xpose.msra.mxu0 0.0
        %774 = vmatprep.subr.mxu0 0.0
        %775 = vmatpush1.xpose.msra.mxu0 0.0
        %776 = vmatprep.subr.mxu0 0.0
        %777 = vmatpush1.xpose.msra.mxu0 0.0
        %778 = vmatprep.subr.mxu0 0.0
        %779 = vmatpush1.xpose.msra.mxu0 0.0
        %780 = vmatprep.subr.mxu0 0.0
        %781 = vmatpush1.xpose.msra.mxu0 0.0
        %782 = vmatprep.subr.mxu0 0.0
        %783 = vmatpush1.xpose.msra.mxu0 0.0
        %784 = vmatprep.subr.mxu0 0.0
        %785 = vmatpush1.xpose.msra.mxu0 0.0
        %786 = vmatprep.subr.mxu0 0.0
        %787 = vmatpush1.xpose.msra.mxu0 0.0
        %788 = vmatprep.subr.mxu0 0.0
        %789 = vmatpush1.xpose.msra.mxu0 0.0
        %790 = vmatprep.subr.mxu0 0.0
        %791 = vmatpush1.xpose.msra.mxu0 0.0
        %792 = vmatprep.subr.mxu0 0.0
        %793 = vmatpush1.xpose.msra.mxu0 0.0
        %794 = vmatprep.subr.mxu0 0.0
        %795 = vmatpush1.xpose.msra.mxu0 0.0
        %796 = vmatprep.subr.mxu0 0.0
        %797 = vmatpush1.xpose.msra.mxu0 0.0
        %798 = vmatprep.subr.mxu0 0.0
        %799 = vmatpush1.xpose.msra.mxu0 0.0
        %800 = vmatprep.subr.mxu0 0.0
        %801 = vmatpush1.xpose.msra.mxu0 0.0
        %802 = vmatprep.subr.mxu0 0.0
        %803 = vmatpush1.xpose.msra.mxu0 0.0
        %804 = vmatprep.subr.mxu0 0.0
        %805 = vmatpush1.xpose.msra.mxu0 0.0
        %806 = vmatprep.subr.mxu0 0.0
        %807 = vmatpush1.xpose.msra.mxu0 0.0
        %808 = vmatprep.subr.mxu0 0.0
        %809 = vmatpush1.xpose.msra.mxu0 0.0
        %810 = vmatprep.mubr.f32.mxu0 0.0
        %811 = vmatmul.mubr.f32.gmra.mrb[0].mxu0 %v742
        %v812 = vpop.f32.mrb[0].mxu0
        %v813 = vadd.f32 0.0, %v812
        %v814 = vpop.f32.mrb[0].mxu0
        %815 = vdwg.mxu0
        %v816 = vmul.f32 %v585, 0.35355338
        %v817 = vmul.f32 %v661, 0.35355338
        %v818 = vmul.f32 %v737, 0.35355338
        %v819 = vmul.f32 %v813, 0.35355338
        %821 = vrot.lane.b32.xlu0 %v817, 8
        %v822 = vpop.permute.xlu0 %821
        %825 = vrot.lane.b32.xlu0 %v818, 16
        %v826 = vpop.permute.xlu0 %825
        %829 = vrot.lane.b32.xlu0 %v819, 24
        %v830 = vpop.permute.xlu0 %829
        %v832 = vsel %vm513, %v816, %v822
        %vm833 = vcmask 130048
        %v834 = vsel %vm833, %v832, %v826
        %vm835 = vcmask 195584
        %v836 = vsel %vm835, %v834, %v830
        %837 = vst.msk [vmem:[%s416] sm:$0xff] %vm430, %v836
        %v838 = vsel %vm513, %v816, -inf
        %839 = vmax.xlane.f32.xlu0 %v838
        %v840 = vpop.xlane.xlu0 %839
        %v841 = vsel %vm513, %v817, -inf
        %842 = vmax.xlane.f32.xlu0 %v841
        %v843 = vpop.xlane.xlu0 %842
        %v844 = vsel %vm513, %v818, -inf
        %845 = vmax.xlane.f32.xlu0 %v844
        %v846 = vpop.xlane.xlu0 %845
        %v847 = vsel %vm513, %v819, -inf
        %848 = vmax.xlane.f32.xlu0 %v847
        %v849 = vpop.xlane.xlu0 %848
        %v850 = vsub.f32 %v816, %v840
        %v851 = vsub.f32 %v817, %v843
        %v852 = vsub.f32 %v818, %v846
        %v853 = vsub.f32 %v819, %v849
        %v854 = vmul.f32 %v850, 1.442695
        %v855 = vpow.pop %v854
        %v856 = vmul.f32 %v851, 1.442695
        %v857 = vpow.pop %v856
        %v858 = vmul.f32 %v852, 1.442695
        %v859 = vpow.pop %v858
        %v860 = vmul.f32 %v853, 1.442695
        %v861 = vpow.pop %v860
        %v862 = vsel %vm513, %v855, 0.0
        %863 = vadd.xlane.f32.xlu0 %v862
        %v864 = vpop.xlane.xlu0 %863
        %v865 = vsel %vm513, %v857, 0.0
        %866 = vadd.xlane.f32.xlu0 %v865
        %v867 = vpop.xlane.xlu0 %866
        %v868 = vsel %vm513, %v859, 0.0
        %869 = vadd.xlane.f32.xlu0 %v868
        %v870 = vpop.xlane.xlu0 %869
        %v871 = vsel %vm513, %v861, 0.0
        %872 = vadd.xlane.f32.xlu0 %v871
        %v873 = vpop.xlane.xlu0 %872
        %v874 = vrcp.pop %v864
        %v875 = vrcp.pop %v867
        %v876 = vrcp.pop %v870
        %v877 = vrcp.pop %v873
        %v878 = vmul.f32 %v855, %v874
        %v879 = vmul.f32 %v857, %v875
        %v880 = vmul.f32 %v859, %v876
        %v881 = vmul.f32 %v861, %v877
        %882 = vrot.lane.b32.xlu0 %v501, 64
        %v883 = vpop.permute.xlu0 %882
        %v886 = vsel %vm513, %v878, 0
        %888 = vmatprep.subr.mxu0 0.0
        %889 = vmatpush1.msra.mxu0 %v883
        %890 = vmatprep.subr.mxu0 0.0
        %891 = vmatpush1.msra.mxu0 0.0
        %892 = vmatprep.subr.mxu0 0.0
        %893 = vmatpush1.msra.mxu0 0.0
        %894 = vmatprep.subr.mxu0 0.0
        %895 = vmatpush1.msra.mxu0 0.0
        %896 = vmatprep.subr.mxu0 0.0
        %897 = vmatpush1.msra.mxu0 0.0
        %898 = vmatprep.subr.mxu0 0.0
        %899 = vmatpush1.msra.mxu0 0.0
        %900 = vmatprep.subr.mxu0 0.0
        %901 = vmatpush1.msra.mxu0 0.0
        %902 = vmatprep.subr.mxu0 0.0
        %903 = vmatpush1.msra.mxu0 0.0
        %904 = vmatprep.subr.mxu0 0.0
        %905 = vmatpush1.msra.mxu0 0.0
        %906 = vmatprep.subr.mxu0 0.0
        %907 = vmatpush1.msra.mxu0 0.0
        %908 = vmatprep.subr.mxu0 0.0
        %909 = vmatpush1.msra.mxu0 0.0
        %910 = vmatprep.subr.mxu0 0.0
        %911 = vmatpush1.msra.mxu0 0.0
        %912 = vmatprep.subr.mxu0 0.0
        %913 = vmatpush1.msra.mxu0 0.0
        %914 = vmatprep.subr.mxu0 0.0
        %915 = vmatpush1.msra.mxu0 0.0
        %916 = vmatprep.subr.mxu0 0.0
        %917 = vmatpush1.msra.mxu0 0.0
        %918 = vmatprep.subr.mxu0 0.0
        %919 = vmatpush1.msra.mxu0 0.0
        %920 = vmatprep.subr.mxu0 0.0
        %921 = vmatpush1.msra.mxu0 0.0
        %922 = vmatprep.subr.mxu0 0.0
        %923 = vmatpush1.msra.mxu0 0.0
        %924 = vmatprep.subr.mxu0 0.0
        %925 = vmatpush1.msra.mxu0 0.0
        %926 = vmatprep.subr.mxu0 0.0
        %927 = vmatpush1.msra.mxu0 0.0
        %928 = vmatprep.subr.mxu0 0.0
        %929 = vmatpush1.msra.mxu0 0.0
        %930 = vmatprep.subr.mxu0 0.0
        %931 = vmatpush1.msra.mxu0 0.0
        %932 = vmatprep.subr.mxu0 0.0
        %933 = vmatpush1.msra.mxu0 0.0
        %934 = vmatprep.subr.mxu0 0.0
        %935 = vmatpush1.msra.mxu0 0.0
        %936 = vmatprep.subr.mxu0 0.0
        %937 = vmatpush1.msra.mxu0 0.0
        %938 = vmatprep.subr.mxu0 0.0
        %939 = vmatpush1.msra.mxu0 0.0
        %940 = vmatprep.subr.mxu0 0.0
        %941 = vmatpush1.msra.mxu0 0.0
        %942 = vmatprep.subr.mxu0 0.0
        %943 = vmatpush1.msra.mxu0 0.0
        %944 = vmatprep.subr.mxu0 0.0
        %945 = vmatpush1.msra.mxu0 0.0
        %946 = vmatprep.subr.mxu0 0.0
        %947 = vmatpush1.msra.mxu0 0.0
        %948 = vmatprep.subr.mxu0 0.0
        %949 = vmatpush1.msra.mxu0 0.0
        %950 = vmatprep.subr.mxu0 0.0
        %951 = vmatpush1.msra.mxu0 0.0
        %952 = vmatprep.mubr.f32.mxu0 0.0
        %953 = vmatmul.mubr.f32.gmra.mrb[0].mxu0 %v886
        %v954 = vpop.f32.mrb[0].mxu0
        %v955 = vadd.f32 0.0, %v954
        %v956 = vpop.f32.mrb[0].mxu0
        %957 = vdwg.mxu0
        %958 = vrot.lane.b32.xlu0 %v506, 64
        %v959 = vpop.permute.xlu0 %958
        %v962 = vsel %vm513, %v879, 0
        %964 = vmatprep.subr.mxu0 0.0
        %965 = vmatpush1.msra.mxu0 %v959
        %966 = vmatprep.subr.mxu0 0.0
        %967 = vmatpush1.msra.mxu0 0.0
        %968 = vmatprep.subr.mxu0 0.0
        %969 = vmatpush1.msra.mxu0 0.0
        %970 = vmatprep.subr.mxu0 0.0
        %971 = vmatpush1.msra.mxu0 0.0
        %972 = vmatprep.subr.mxu0 0.0
        %973 = vmatpush1.msra.mxu0 0.0
        %974 = vmatprep.subr.mxu0 0.0
        %975 = vmatpush1.msra.mxu0 0.0
        %976 = vmatprep.subr.mxu0 0.0
        %977 = vmatpush1.msra.mxu0 0.0
        %978 = vmatprep.subr.mxu0 0.0
        %979 = vmatpush1.msra.mxu0 0.0
        %980 = vmatprep.subr.mxu0 0.0
        %981 = vmatpush1.msra.mxu0 0.0
        %982 = vmatprep.subr.mxu0 0.0
        %983 = vmatpush1.msra.mxu0 0.0
        %984 = vmatprep.subr.mxu0 0.0
        %985 = vmatpush1.msra.mxu0 0.0
        %986 = vmatprep.subr.mxu0 0.0
        %987 = vmatpush1.msra.mxu0 0.0
        %988 = vmatprep.subr.mxu0 0.0
        %989 = vmatpush1.msra.mxu0 0.0
        %990 = vmatprep.subr.mxu0 0.0
        %991 = vmatpush1.msra.mxu0 0.0
        %992 = vmatprep.subr.mxu0 0.0
        %993 = vmatpush1.msra.mxu0 0.0
        %994 = vmatprep.subr.mxu0 0.0
        %995 = vmatpush1.msra.mxu0 0.0
        %996 = vmatprep.subr.mxu0 0.0
        %997 = vmatpush1.msra.mxu0 0.0
        %998 = vmatprep.subr.mxu0 0.0
        %999 = vmatpush1.msra.mxu0 0.0
        %1000 = vmatprep.subr.mxu0 0.0
        %1001 = vmatpush1.msra.mxu0 0.0
        %1002 = vmatprep.subr.mxu0 0.0
        %1003 = vmatpush1.msra.mxu0 0.0
        %1004 = vmatprep.subr.mxu0 0.0
        %1005 = vmatpush1.msra.mxu0 0.0
        %1006 = vmatprep.subr.mxu0 0.0
        %1007 = vmatpush1.msra.mxu0 0.0
        %1008 = vmatprep.subr.mxu0 0.0
        %1009 = vmatpush1.msra.mxu0 0.0
        %1010 = vmatprep.subr.mxu0 0.0
        %1011 = vmatpush1.msra.mxu0 0.0
        %1012 = vmatprep.subr.mxu0 0.0
        %1013 = vmatpush1.msra.mxu0 0.0
        %1014 = vmatprep.subr.mxu0 0.0
        %1015 = vmatpush1.msra.mxu0 0.0
        %1016 = vmatprep.subr.mxu0 0.0
        %1017 = vmatpush1.msra.mxu0 0.0
        %1018 = vmatprep.subr.mxu0 0.0
        %1019 = vmatpush1.msra.mxu0 0.0
        %1020 = vmatprep.subr.mxu0 0.0
        %1021 = vmatpush1.msra.mxu0 0.0
        %1022 = vmatprep.subr.mxu0 0.0
        %1023 = vmatpush1.msra.mxu0 0.0
        %1024 = vmatprep.subr.mxu0 0.0
        %1025 = vmatpush1.msra.mxu0 0.0
        %1026 = vmatprep.subr.mxu0 0.0
        %1027 = vmatpush1.msra.mxu0 0.0
        %1028 = vmatprep.mubr.f32.mxu0 0.0
        %1029 = vmatmul.mubr.f32.gmra.mrb[0].mxu0 %v962
        %v1030 = vpop.f32.mrb[0].mxu0
        %v1031 = vadd.f32 0.0, %v1030
        %v1032 = vpop.f32.mrb[0].mxu0
        %1033 = vdwg.mxu0
        %1034 = vrot.lane.b32.xlu0 %v508, 64
        %v1035 = vpop.permute.xlu0 %1034
        %v1038 = vsel %vm513, %v880, 0
        %1040 = vmatprep.subr.mxu0 0.0
        %1041 = vmatpush1.msra.mxu0 %v1035
        %1042 = vmatprep.subr.mxu0 0.0
        %1043 = vmatpush1.msra.mxu0 0.0
        %1044 = vmatprep.subr.mxu0 0.0
        %1045 = vmatpush1.msra.mxu0 0.0
        %1046 = vmatprep.subr.mxu0 0.0
        %1047 = vmatpush1.msra.mxu0 0.0
        %1048 = vmatprep.subr.mxu0 0.0
        %1049 = vmatpush1.msra.mxu0 0.0
        %1050 = vmatprep.subr.mxu0 0.0
        %1051 = vmatpush1.msra.mxu0 0.0
        %1052 = vmatprep.subr.mxu0 0.0
        %1053 = vmatpush1.msra.mxu0 0.0
        %1054 = vmatprep.subr.mxu0 0.0
        %1055 = vmatpush1.msra.mxu0 0.0
        %1056 = vmatprep.subr.mxu0 0.0
        %1057 = vmatpush1.msra.mxu0 0.0
        %1058 = vmatprep.subr.mxu0 0.0
        %1059 = vmatpush1.msra.mxu0 0.0
        %1060 = vmatprep.subr.mxu0 0.0
        %1061 = vmatpush1.msra.mxu0 0.0
        %1062 = vmatprep.subr.mxu0 0.0
        %1063 = vmatpush1.msra.mxu0 0.0
        %1064 = vmatprep.subr.mxu0 0.0
        %1065 = vmatpush1.msra.mxu0 0.0
        %1066 = vmatprep.subr.mxu0 0.0
        %1067 = vmatpush1.msra.mxu0 0.0
        %1068 = vmatprep.subr.mxu0 0.0
        %1069 = vmatpush1.msra.mxu0 0.0
        %1070 = vmatprep.subr.mxu0 0.0
        %1071 = vmatpush1.msra.mxu0 0.0
        %1072 = vmatprep.subr.mxu0 0.0
        %1073 = vmatpush1.msra.mxu0 0.0
        %1074 = vmatprep.subr.mxu0 0.0
        %1075 = vmatpush1.msra.mxu0 0.0
        %1076 = vmatprep.subr.mxu0 0.0
        %1077 = vmatpush1.msra.mxu0 0.0
        %1078 = vmatprep.subr.mxu0 0.0
        %1079 = vmatpush1.msra.mxu0 0.0
        %1080 = vmatprep.subr.mxu0 0.0
        %1081 = vmatpush1.msra.mxu0 0.0
        %1082 = vmatprep.subr.mxu0 0.0
        %1083 = vmatpush1.msra.mxu0 0.0
        %1084 = vmatprep.subr.mxu0 0.0
        %1085 = vmatpush1.msra.mxu0 0.0
        %1086 = vmatprep.subr.mxu0 0.0
        %1087 = vmatpush1.msra.mxu0 0.0
        %1088 = vmatprep.subr.mxu0 0.0
        %1089 = vmatpush1.msra.mxu0 0.0
        %1090 = vmatprep.subr.mxu0 0.0
        %1091 = vmatpush1.msra.mxu0 0.0
        %1092 = vmatprep.subr.mxu0 0.0
        %1093 = vmatpush1.msra.mxu0 0.0
        %1094 = vmatprep.subr.mxu0 0.0
        %1095 = vmatpush1.msra.mxu0 0.0
        %1096 = vmatprep.subr.mxu0 0.0
        %1097 = vmatpush1.msra.mxu0 0.0
        %1098 = vmatprep.subr.mxu0 0.0
        %1099 = vmatpush1.msra.mxu0 0.0
        %1100 = vmatprep.subr.mxu0 0.0
        %1101 = vmatpush1.msra.mxu0 0.0
        %1102 = vmatprep.subr.mxu0 0.0
        %1103 = vmatpush1.msra.mxu0 0.0
        %1104 = vmatprep.mubr.f32.mxu0 0.0
        %1105 = vmatmul.mubr.f32.gmra.mrb[0].mxu0 %v1038
        %v1106 = vpop.f32.mrb[0].mxu0
        %v1107 = vadd.f32 0.0, %v1106
        %v1108 = vpop.f32.mrb[0].mxu0
        %1109 = vdwg.mxu0
        %1110 = vrot.lane.b32.xlu0 %v510, 64
        %v1111 = vpop.permute.xlu0 %1110
        %v1114 = vsel %vm513, %v881, 0
        %1116 = vmatprep.subr.mxu0 0.0
        %1117 = vmatpush1.msra.mxu0 %v1111
        %1118 = vmatprep.subr.mxu0 0.0
        %1119 = vmatpush1.msra.mxu0 0.0
        %1120 = vmatprep.subr.mxu0 0.0
        %1121 = vmatpush1.msra.mxu0 0.0
        %1122 = vmatprep.subr.mxu0 0.0
        %1123 = vmatpush1.msra.mxu0 0.0
        %1124 = vmatprep.subr.mxu0 0.0
        %1125 = vmatpush1.msra.mxu0 0.0
        %1126 = vmatprep.subr.mxu0 0.0
        %1127 = vmatpush1.msra.mxu0 0.0
        %1128 = vmatprep.subr.mxu0 0.0
        %1129 = vmatpush1.msra.mxu0 0.0
        %1130 = vmatprep.subr.mxu0 0.0
        %1131 = vmatpush1.msra.mxu0 0.0
        %1132 = vmatprep.subr.mxu0 0.0
        %1133 = vmatpush1.msra.mxu0 0.0
        %1134 = vmatprep.subr.mxu0 0.0
        %1135 = vmatpush1.msra.mxu0 0.0
        %1136 = vmatprep.subr.mxu0 0.0
        %1137 = vmatpush1.msra.mxu0 0.0
        %1138 = vmatprep.subr.mxu0 0.0
        %1139 = vmatpush1.msra.mxu0 0.0
        %1140 = vmatprep.subr.mxu0 0.0
        %1141 = vmatpush1.msra.mxu0 0.0
        %1142 = vmatprep.subr.mxu0 0.0
        %1143 = vmatpush1.msra.mxu0 0.0
        %1144 = vmatprep.subr.mxu0 0.0
        %1145 = vmatpush1.msra.mxu0 0.0
        %1146 = vmatprep.subr.mxu0 0.0
        %1147 = vmatpush1.msra.mxu0 0.0
        %1148 = vmatprep.subr.mxu0 0.0
        %1149 = vmatpush1.msra.mxu0 0.0
        %1150 = vmatprep.subr.mxu0 0.0
        %1151 = vmatpush1.msra.mxu0 0.0
        %1152 = vmatprep.subr.mxu0 0.0
        %1153 = vmatpush1.msra.mxu0 0.0
        %1154 = vmatprep.subr.mxu0 0.0
        %1155 = vmatpush1.msra.mxu0 0.0
        %1156 = vmatprep.subr.mxu0 0.0
        %1157 = vmatpush1.msra.mxu0 0.0
        %1158 = vmatprep.subr.mxu0 0.0
        %1159 = vmatpush1.msra.mxu0 0.0
        %1160 = vmatprep.subr.mxu0 0.0
        %1161 = vmatpush1.msra.mxu0 0.0
        %1162 = vmatprep.subr.mxu0 0.0
        %1163 = vmatpush1.msra.mxu0 0.0
        %1164 = vmatprep.subr.mxu0 0.0
        %1165 = vmatpush1.msra.mxu0 0.0
        %1166 = vmatprep.subr.mxu0 0.0
        %1167 = vmatpush1.msra.mxu0 0.0
        %1168 = vmatprep.subr.mxu0 0.0
        %1169 = vmatpush1.msra.mxu0 0.0
        %1170 = vmatprep.subr.mxu0 0.0
        %1171 = vmatpush1.msra.mxu0 0.0
        %1172 = vmatprep.subr.mxu0 0.0
        %1173 = vmatpush1.msra.mxu0 0.0
        %1174 = vmatprep.subr.mxu0 0.0
        %1175 = vmatpush1.msra.mxu0 0.0
        %1176 = vmatprep.subr.mxu0 0.0
        %1177 = vmatpush1.msra.mxu0 0.0
        %1178 = vmatprep.subr.mxu0 0.0
        %1179 = vmatpush1.msra.mxu0 0.0
        %1180 = vmatprep.mubr.f32.mxu0 0.0
        %1181 = vmatmul.mubr.f32.gmra.mrb[0].mxu0 %v1114
        %v1182 = vpop.f32.mrb[0].mxu0
        %v1183 = vadd.f32 0.0, %v1182
        %v1184 = vpop.f32.mrb[0].mxu0
        %1185 = vdwg.mxu0
        %1187 = vrot.lane.b32.xlu0 %v1031, 8
        %v1188 = vpop.permute.xlu0 %1187
        %1191 = vrot.lane.b32.xlu0 %v1107, 16
        %v1192 = vpop.permute.xlu0 %1191
        %1195 = vrot.lane.b32.xlu0 %v1183, 24
        %v1196 = vpop.permute.xlu0 %1195
        %v1198 = vsel %vm513, %v955, %v1188
        %v1199 = vsel %vm833, %v1198, %v1192
        %v1200 = vsel %vm835, %v1199, %v1196
        %v1201 = vld [vmem:[#allocation7] sm:$0xff]
        %v1202 = vld [vmem:[#allocation7 + $0x8] sm:$0xff]
        %v1203 = vld [vmem:[#allocation7 + $0x10] sm:$0xff]
        %v1204 = vld [vmem:[#allocation7 + $0x18] sm:$0xff]
        %v1205 = vlaneseq
        %v1206 = vshrl.u32 %v1205, 7
        %v1207 = vsub.s32 0, %v1206
        %v1208 = vrot.slane %v418, %v1207
        %v1210 = vsel %vm430, %v1200, 0
        %1212 = vmatprep.subr.mxu0 0.0
        %1213 = vmatpush1.msra.mxu0 %v1201
        %1214 = vmatprep.subr.mxu0 0.0
        %1215 = vmatpush1.msra.mxu0 %v1202
        %1216 = vmatprep.subr.mxu0 0.0
        %1217 = vmatpush1.msra.mxu0 %v1203
        %1218 = vmatprep.subr.mxu0 0.0
        %1219 = vmatpush1.msra.mxu0 %v1204
        %1220 = vmatprep.subr.mxu0 0.0
        %1221 = vmatpush1.msra.mxu0 0.0
        %1222 = vmatprep.subr.mxu0 0.0
        %1223 = vmatpush1.msra.mxu0 0.0
        %1224 = vmatprep.subr.mxu0 0.0
        %1225 = vmatpush1.msra.mxu0 0.0
        %1226 = vmatprep.subr.mxu0 0.0
        %1227 = vmatpush1.msra.mxu0 0.0
        %1228 = vmatprep.subr.mxu0 0.0
        %1229 = vmatpush1.msra.mxu0 0.0
        %1230 = vmatprep.subr.mxu0 0.0
        %1231 = vmatpush1.msra.mxu0 0.0
        %1232 = vmatprep.subr.mxu0 0.0
        %1233 = vmatpush1.msra.mxu0 0.0
        %1234 = vmatprep.subr.mxu0 0.0
        %1235 = vmatpush1.msra.mxu0 0.0
        %1236 = vmatprep.subr.mxu0 0.0
        %1237 = vmatpush1.msra.mxu0 0.0
        %1238 = vmatprep.subr.mxu0 0.0
        %1239 = vmatpush1.msra.mxu0 0.0
        %1240 = vmatprep.subr.mxu0 0.0
        %1241 = vmatpush1.msra.mxu0 0.0
        %1242 = vmatprep.subr.mxu0 0.0
        %1243 = vmatpush1.msra.mxu0 0.0
        %1244 = vmatprep.subr.mxu0 0.0
        %1245 = vmatpush1.msra.mxu0 0.0
        %1246 = vmatprep.subr.mxu0 0.0
        %1247 = vmatpush1.msra.mxu0 0.0
        %1248 = vmatprep.subr.mxu0 0.0
        %1249 = vmatpush1.msra.mxu0 0.0
        %1250 = vmatprep.subr.mxu0 0.0
        %1251 = vmatpush1.msra.mxu0 0.0
        %1252 = vmatprep.subr.mxu0 0.0
        %1253 = vmatpush1.msra.mxu0 0.0
        %1254 = vmatprep.subr.mxu0 0.0
        %1255 = vmatpush1.msra.mxu0 0.0
        %1256 = vmatprep.subr.mxu0 0.0
        %1257 = vmatpush1.msra.mxu0 0.0
        %1258 = vmatprep.subr.mxu0 0.0
        %1259 = vmatpush1.msra.mxu0 0.0
        %1260 = vmatprep.subr.mxu0 0.0
        %1261 = vmatpush1.msra.mxu0 0.0
        %1262 = vmatprep.subr.mxu0 0.0
        %1263 = vmatpush1.msra.mxu0 0.0
        %1264 = vmatprep.subr.mxu0 0.0
        %1265 = vmatpush1.msra.mxu0 0.0
        %1266 = vmatprep.subr.mxu0 0.0
        %1267 = vmatpush1.msra.mxu0 0.0
        %1268 = vmatprep.subr.mxu0 0.0
        %1269 = vmatpush1.msra.mxu0 0.0
        %1270 = vmatprep.subr.mxu0 0.0
        %1271 = vmatpush1.msra.mxu0 0.0
        %1272 = vmatprep.subr.mxu0 0.0
        %1273 = vmatpush1.msra.mxu0 0.0
        %1274 = vmatprep.subr.mxu0 0.0
        %1275 = vmatpush1.msra.mxu0 0.0
        %1276 = vmatprep.mubr.f32.mxu0 0.0
        %1277 = vmatmul.mubr.f32.gmra.mrb[0].mxu0 %v1210
        %v1278 = vpop.f32.mrb[0].mxu0
        %v1279 = vadd.f32 %v1208, %v1278
        %v1280 = vpop.f32.mrb[0].mxu0
        %1281 = vdwg.mxu0
        %v1282 = vadd.f32 %v1279, %v417
        %v1283 = vsel %vm430, %v1282, 0.0
        %1284 = vadd.xlane.f32.xlu0 %v1283
        %v1285 = vpop.xlane.xlu0 %1284
        %v1286 = vrcp.pop 32.0
        %v1287 = vmul.f32 %v1285, %v1286
        %v1288 = vsub.f32 %v1282, %v1287
        %v1289 = vmul.f32 %v1288, %v1288
        %v1290 = vsel %vm430, %v1289, 0.0
        %1291 = vadd.xlane.f32.xlu0 %v1290
        %v1292 = vpop.xlane.xlu0 %1291
        %v1293 = vmul.f32 %v1292, %v1286
        %v1294 = vadd.f32 %v1293, 1e-05
        %v1295 = vrsqrt.pop %v1294
        %v1296 = vmul.f32 %v1288, %v1295
        %v1297 = vlaneseq
        %v1298 = vshrl.u32 %v1297, 7
        %v1299 = vsub.s32 1, %v1298
        %v1300 = vrot.slane %v418, %v1299
        %v1301 = vmul.f32 %v1296, %v1300
        %v1302 = vlaneseq
        %v1303 = vshrl.u32 %v1302, 7
        %v1304 = vsub.s32 2, %v1303
        %v1305 = vrot.slane %v418, %v1304
        %v1306 = vadd.f32 %v1301, %v1305
        %v1307 = vld [vmem:[#allocation8] sm:$0xff]
        %v1308 = vld [vmem:[#allocation8 + $0x8] sm:$0xff]
        %v1309 = vld [vmem:[#allocation8 + $0x10] sm:$0xff]
        %v1310 = vld [vmem:[#allocation8 + $0x18] sm:$0xff]
        %v1311 = vld [vmem:[%s5] sm:$0x1]
        %v1313 = vlaneseq
        %v1314 = vshrl.u32 %v1313, 7
        %v1315 = vsub.s32 0, %v1314
        %v1316 = vrot.slane %v1311, %v1315
        %v1319 = vsel %vm430, %v1306, 0
        %1321 = vmatprep.subr.mxu0 0.0
        %1322 = vmatpush1.msra.mxu0 %v1307
        %1323 = vmatprep.subr.mxu0 0.0
        %1324 = vmatpush1.msra.mxu0 %v1308
        %1325 = vmatprep.subr.mxu0 0.0
        %1326 = vmatpush1.msra.mxu0 %v1309
        %1327 = vmatprep.subr.mxu0 0.0
        %1328 = vmatpush1.msra.mxu0 %v1310
        %1329 = vmatprep.subr.mxu0 0.0
        %1330 = vmatpush1.msra.mxu0 0.0
        %1331 = vmatprep.subr.mxu0 0.0
        %1332 = vmatpush1.msra.mxu0 0.0
        %1333 = vmatprep.subr.mxu0 0.0
        %1334 = vmatpush1.msra.mxu0 0.0
        %1335 = vmatprep.subr.mxu0 0.0
        %1336 = vmatpush1.msra.mxu0 0.0
        %1337 = vmatprep.subr.mxu0 0.0
        %1338 = vmatpush1.msra.mxu0 0.0
        %1339 = vmatprep.subr.mxu0 0.0
        %1340 = vmatpush1.msra.mxu0 0.0
        %1341 = vmatprep.subr.mxu0 0.0
        %1342 = vmatpush1.msra.mxu0 0.0
        %1343 = vmatprep.subr.mxu0 0.0
        %1344 = vmatpush1.msra.mxu0 0.0
        %1345 = vmatprep.subr.mxu0 0.0
        %1346 = vmatpush1.msra.mxu0 0.0
        %1347 = vmatprep.subr.mxu0 0.0
        %1348 = vmatpush1.msra.mxu0 0.0
        %1349 = vmatprep.subr.mxu0 0.0
        %1350 = vmatpush1.msra.mxu0 0.0
        %1351 = vmatprep.subr.mxu0 0.0
        %1352 = vmatpush1.msra.mxu0 0.0
        %1353 = vmatprep.subr.mxu0 0.0
        %1354 = vmatpush1.msra.mxu0 0.0
        %1355 = vmatprep.subr.mxu0 0.0
        %1356 = vmatpush1.msra.mxu0 0.0
        %1357 = vmatprep.subr.mxu0 0.0
        %1358 = vmatpush1.msra.mxu0 0.0
        %1359 = vmatprep.subr.mxu0 0.0
        %1360 = vmatpush1.msra.mxu0 0.0
        %1361 = vmatprep.subr.mxu0 0.0
        %1362 = vmatpush1.msra.mxu0 0.0
        %1363 = vmatprep.subr.mxu0 0.0
        %1364 = vmatpush1.msra.mxu0 0.0
        %1365 = vmatprep.subr.mxu0 0.0
        %1366 = vmatpush1.msra.mxu0 0.0
        %1367 = vmatprep.subr.mxu0 0.0
        %1368 = vmatpush1.msra.mxu0 0.0
        %1369 = vmatprep.subr.mxu0 0.0
        %1370 = vmatpush1.msra.mxu0 0.0
        %1371 = vmatprep.subr.mxu0 0.0
        %1372 = vmatpush1.msra.mxu0 0.0
        %1373 = vmatprep.subr.mxu0 0.0
        %1374 = vmatpush1.msra.mxu0 0.0
        %1375 = vmatprep.subr.mxu0 0.0
        %1376 = vmatpush1.msra.mxu0 0.0
        %1377 = vmatprep.subr.mxu0 0.0
        %1378 = vmatpush1.msra.mxu0 0.0
        %1379 = vmatprep.subr.mxu0 0.0
        %1380 = vmatpush1.msra.mxu0 0.0
        %1381 = vmatprep.subr.mxu0 0.0
        %1382 = vmatpush1.msra.mxu0 0.0
        %1383 = vmatprep.subr.mxu0 0.0
        %1384 = vmatpush1.msra.mxu0 0.0
        %1385 = vmatprep.mubr.f32.mxu0 0.0
        %1386 = vmatmul.mubr.f32.gmra.mrb[0].mxu0 %v1319
        %v1387 = vpop.f32.mrb[0].mxu0
        %v1388 = vadd.f32 %v1316, %v1387
        %v1389 = vpop.f32.mrb[0].mxu0
        %1390 = vdwg.mxu0
        %v1391 = vmax.f32 %v1388, 0.0
        %v1392 = vld [vmem:[#allocation10] sm:$0xff]
        %v1393 = vld [vmem:[#allocation10 + $0x8] sm:$0xff]
        %v1394 = vld [vmem:[#allocation10 + $0x10] sm:$0xff]
        %v1395 = vld [vmem:[#allocation10 + $0x18] sm:$0xff]
        %v1396 = vlaneseq
        %v1397 = vshrl.u32 %v1396, 7
        %v1398 = vsub.s32 3, %v1397
        %v1399 = vrot.slane %v418, %v1398
        %v1401 = vsel %vm430, %v1391, 0
        %1403 = vmatprep.subr.mxu0 0.0
        %1404 = vmatpush1.msra.mxu0 %v1392
        %1405 = vmatprep.subr.mxu0 0.0
        %1406 = vmatpush1.msra.mxu0 %v1393
        %1407 = vmatprep.subr.mxu0 0.0
        %1408 = vmatpush1.msra.mxu0 %v1394
        %1409 = vmatprep.subr.mxu0 0.0
        %1410 = vmatpush1.msra.mxu0 %v1395
        %1411 = vmatprep.subr.mxu0 0.0
        %1412 = vmatpush1.msra.mxu0 0.0
        %1413 = vmatprep.subr.mxu0 0.0
        %1414 = vmatpush1.msra.mxu0 0.0
        %1415 = vmatprep.subr.mxu0 0.0
        %1416 = vmatpush1.msra.mxu0 0.0
        %1417 = vmatprep.subr.mxu0 0.0
        %1418 = vmatpush1.msra.mxu0 0.0
        %1419 = vmatprep.subr.mxu0 0.0
        %1420 = vmatpush1.msra.mxu0 0.0
        %1421 = vmatprep.subr.mxu0 0.0
        %1422 = vmatpush1.msra.mxu0 0.0
        %1423 = vmatprep.subr.mxu0 0.0
        %1424 = vmatpush1.msra.mxu0 0.0
        %1425 = vmatprep.subr.mxu0 0.0
        %1426 = vmatpush1.msra.mxu0 0.0
        %1427 = vmatprep.subr.mxu0 0.0
        %1428 = vmatpush1.msra.mxu0 0.0
        %1429 = vmatprep.subr.mxu0 0.0
        %1430 = vmatpush1.msra.mxu0 0.0
        %1431 = vmatprep.subr.mxu0 0.0
        %1432 = vmatpush1.msra.mxu0 0.0
        %1433 = vmatprep.subr.mxu0 0.0
        %1434 = vmatpush1.msra.mxu0 0.0
        %1435 = vmatprep.subr.mxu0 0.0
        %1436 = vmatpush1.msra.mxu0 0.0
        %1437 = vmatprep.subr.mxu0 0.0
        %1438 = vmatpush1.msra.mxu0 0.0
        %1439 = vmatprep.subr.mxu0 0.0
        %1440 = vmatpush1.msra.mxu0 0.0
        %1441 = vmatprep.subr.mxu0 0.0
        %1442 = vmatpush1.msra.mxu0 0.0
        %1443 = vmatprep.subr.mxu0 0.0
        %1444 = vmatpush1.msra.mxu0 0.0
        %1445 = vmatprep.subr.mxu0 0.0
        %1446 = vmatpush1.msra.mxu0 0.0
        %1447 = vmatprep.subr.mxu0 0.0
        %1448 = vmatpush1.msra.mxu0 0.0
        %1449 = vmatprep.subr.mxu0 0.0
        %1450 = vmatpush1.msra.mxu0 0.0
        %1451 = vmatprep.subr.mxu0 0.0
        %1452 = vmatpush1.msra.mxu0 0.0
        %1453 = vmatprep.subr.mxu0 0.0
        %1454 = vmatpush1.msra.mxu0 0.0
        %1455 = vmatprep.subr.mxu0 0.0
        %1456 = vmatpush1.msra.mxu0 0.0
        %1457 = vmatprep.subr.mxu0 0.0
        %1458 = vmatpush1.msra.mxu0 0.0
        %1459 = vmatprep.subr.mxu0 0.0
        %1460 = vmatpush1.msra.mxu0 0.0
        %1461 = vmatprep.subr.mxu0 0.0
        %1462 = vmatpush1.msra.mxu0 0.0
        %1463 = vmatprep.subr.mxu0 0.0
        %1464 = vmatpush1.msra.mxu0 0.0
        %1465 = vmatprep.subr.mxu0 0.0
        %1466 = vmatpush1.msra.mxu0 0.0
        %1467 = vmatprep.mubr.f32.mxu0 0.0
        %1468 = vmatmul.mubr.f32.gmra.mrb[0].mxu0 %v1401
        %v1469 = vpop.f32.mrb[0].mxu0
        %v1470 = vadd.f32 %v1399, %v1469
        %v1471 = vpop.f32.mrb[0].mxu0
        %1472 = vdwg.mxu0
        %v1473 = vadd.f32 %v1470, %v1306
        %v1474 = vsel %vm430, %v1473, 0.0
        %1475 = vadd.xlane.f32.xlu0 %v1474
        %v1476 = vpop.xlane.xlu0 %1475
        %v1477 = vmul.f32 %v1476, %v1286
        %v1478 = vsub.f32 %v1473, %v1477
        %v1479 = vmul.f32 %v1478, %v1478
        %v1480 = vsel %vm430, %v1479, 0.0
        %1481 = vadd.xlane.f32.xlu0 %v1480
        %v1482 = vpop.xlane.xlu0 %1481
        %v1483 = vmul.f32 %v1482, %v1286
        %v1484 = vadd.f32 %v1483, 1e-05
        %v1485 = vrsqrt.pop %v1484
        %v1486 = vmul.f32 %v1478, %v1485
        %v1487 = vlaneseq
        %v1488 = vshrl.u32 %v1487, 7
        %v1489 = vsub.s32 4, %v1488
        %v1490 = vrot.slane %v418, %v1489
        %v1491 = vmul.f32 %v1486, %v1490
        %v1492 = vlaneseq
        %v1493 = vshrl.u32 %v1492, 7
        %v1494 = vsub.s32 5, %v1493
        %v1495 = vrot.slane %v418, %v1494
        %v1496 = vadd.f32 %v1491, %v1495
        %1497 = vst.msk [vmem:[%s409] sm:$0xff] %vm430, %v1496
        %s1498 = sand.u32 %s213, 1
        %s1499 = scalar_lea.sflag [#allocation4], %s1498
        %s1500 = sand.u32 %s213, 1
        %s1501 = smul.addr %s1500, 8
        %s1502 = scalar_lea.vmem [#allocation11], %s1501
        %s1503 = sand.u32 %s239, 1
        %s1504 = scalar_lea.sflag [#allocation13], %s1503
        %s1505 = sand.u32 %s239, 1
        %s1506 = smul.addr %s1505, 8
        %s1507 = scalar_lea.vmem [#allocation12], %s1506
        // Predicated region
        $region73: #{tpu_custom_call.1} parent=51 // pred_check
          %p1508 = pneg %p223
        $region74: #{tpu_custom_call.1} parent=51 // pred_check_branch
          %1510 = sbr.rel (%p1508) target = $region76
        $region75: #{tpu_custom_call.1} parent=51 // pred_region
          %s1512 = ssub.s32 128, 128
          %1513 = vsyncadd %s1499, %s1512
          %s1514 = smul.addr %s32, 128
          %s1515 = scalar_lea.hbm %s8, %s1514
          %s1517 = sshll.u32 %s1502, 4
          %s1518 = int_to_ptr.vmem [resolvable:$true] %s1517
          %1520 = dma.vmem_to_hbm [thread:$0]  %s1518, 128, %s1515, %s1499
        $region76: #{tpu_custom_call.1} parent=51 // pred_fallthru
          _
        // Predicated region
        $region77: #{tpu_custom_call.1} parent=51 // pred_check
          %p1521 = pneg %p249
        $region78: #{tpu_custom_call.1} parent=51 // pred_check_branch
          %1523 = sbr.rel (%p1521) target = $region80
        $region79: #{tpu_custom_call.1} parent=51 // pred_region
          %s1525 = ssub.s32 128, 128
          %1526 = vsyncadd %s1504, %s1525
          %s1527 = smul.addr %s32, 128
          %s1528 = scalar_lea.hbm %s9, %s1527
          %s1530 = sshll.u32 %s1507, 4
          %s1531 = int_to_ptr.vmem [resolvable:$true] %s1530
          %1533 = dma.vmem_to_hbm [thread:$0]  %s1531, 128, %s1528, %s1504
        $region80: #{tpu_custom_call.1} parent=51 // pred_fallthru
          _
      $region52: #{tpu_custom_call.1} parent=5 // pred_fallthru
        _
      %p1534 = scmp.le.s32.totalorder 2, %s27
      // Predicated region
      $region81: #{tpu_custom_call.1} parent=5 // pred_check
        %p1535 = pneg %p1534
      $region82: #{tpu_custom_call.1} parent=5 // pred_check_branch
        %1537 = sbr.rel (%p1535) target = $region84
      $region83: #{tpu_custom_call.1} parent=5 // pred_region
        %s1538 = ssub.s32 %s27, 2
        // Predicated region
        $region85: #{tpu_custom_call.1} parent=83 // pred_check
          %p1539 = pneg %p229
        $region86: #{tpu_custom_call.1} parent=83 // pred_check_branch
          %1541 = sbr.rel (%p1539) target = $region88
        $region87: #{tpu_custom_call.1} parent=83 // pred_region
          %s1542 = sand.u32 %s214, 1
          %s1543 = scalar_lea.sflag [#allocation4], %s1542
          %s1544 = sand.u32 %s214, 1
          %s1545 = smul.addr %s1544, 8
          %s1546 = scalar_lea.vmem [#allocation11], %s1545
          %1547 = dma.done %s1543, 128
        $region88: #{tpu_custom_call.1} parent=83 // pred_fallthru
          _
        // Predicated region
        $region89: #{tpu_custom_call.1} parent=83 // pred_check
          %p1548 = pneg %p255
        $region90: #{tpu_custom_call.1} parent=83 // pred_check_branch
          %1550 = sbr.rel (%p1548) target = $region92
        $region91: #{tpu_custom_call.1} parent=83 // pred_region
          %s1551 = sand.u32 %s240, 1
          %s1552 = scalar_lea.sflag [#allocation13], %s1551
          %s1553 = sand.u32 %s240, 1
          %s1554 = smul.addr %s1553, 8
          %s1555 = scalar_lea.vmem [#allocation12], %s1554
          %1556 = dma.done %s1552, 128
        $region92: #{tpu_custom_call.1} parent=83 // pred_fallthru
          _
      $region84: #{tpu_custom_call.1} parent=5 // pred_fallthru
        _
    $region6: #{tpu_custom_call.1} parent=1 // loop_footer
      %s31 = sadd.s32 1, %s27
    $region7: #{tpu_custom_call.1} parent=1 // loop_footer_branch
      %26 = sbr.rel target = $region3
    $region8: #{tpu_custom_call.1} parent=1 // loop_exit
      _
    %1557 = vsyncpa [#allocation3], 1
    %s1558 = scalar_lea.sflag [#allocation3], 1
    %1559 = vsyncpa %s1558, 1
    %1560 = vsyncpa [#allocation6], 1
    %1561 = vsyncpa [#allocation9], 1
    %1562 = vsyncpa [#allocation4], 1
    %s1563 = scalar_lea.sflag [#allocation4], 1
    %1564 = vsyncpa %s1563, 1
    %1565 = vsyncpa [#allocation13], 1
    %s1566 = scalar_lea.sflag [#allocation13], 1
    %1567 = vsyncpa %s1566, 1

</llo_original>
